<compile_context>
chip_gen: v7x
topology: tpu7x:2x2x1
jax: 0.10.0
libtpu: 0.0.40
codegen_flags: <defaults>
</compile_context>

<pallas_src>
import functools

import jax
import jax.numpy as jnp
from jax.experimental import pallas as pl
from jax.experimental.pallas import tpu as pltpu


def _make_pyramid_kernel(branches, basic, w_dim, num_stripes, nb, k_out, mm_dtype):
    """branches: static tuple of (start_basic_stripe, num_basic_stripes) per branch."""
    bw = basic * w_dim
    inv_counts = [1.0 / float(n_s * bw) for (_, n_s) in branches]

    def kernel(feat_ref, w_ref, scale_ref, shift_ref, out_ref, acc_ref):
        ci = pl.program_id(1)

        @pl.when(ci == 0)
        def _init():
            acc_ref[...] = jnp.zeros_like(acc_ref)

        # ---- per-basic-stripe partial reductions over (stripe rows x W) -----------------
        # feat_ref block is (n_tile, c_tile, H*W); stripe s occupies the contiguous lane
        # window [s*basic*W, (s+1)*basic*W).  Sum accumulates in f32; max stays in the
        # input dtype and is upcast only when combined.
        ssum = []
        smax = []
        for s in range(num_stripes):
            sl = feat_ref[:, :, s * bw:(s + 1) * bw]           # (n_tile, c_tile, bw)
            ssum.append(jnp.sum(sl.astype(jnp.float32), axis=-1))
            smax.append(jnp.max(sl, axis=-1))

        # ---- memoized contiguous-range combines (each (start, len) built exactly once) ---
        range_sum = {(s, 1): ssum[s] for s in range(num_stripes)}
        range_max = {(s, 1): smax[s] for s in range(num_stripes)}

        def get_range(st, ln):
            key = (st, ln)
            if key not in range_sum:
                ps, pm = get_range(st, ln - 1)
                range_sum[key] = ps + ssum[st + ln - 1]
                range_max[key] = jnp.maximum(pm, smax[st + ln - 1])
            return range_sum[key], range_max[key]

        pooled = []
        for bi, (st, ln) in enumerate(branches):               # static unrolled, nb small
            rs, rm = get_range(st, ln)
            pooled.append(rs * inv_counts[bi] + rm.astype(jnp.float32))
        pooled = jnp.stack(pooled, axis=0)                     # (nb, n_tile, c_tile) f32

        # ---- all branch 1x1-conv heads as one batched matmul, accumulated over C blocks --
        acc_ref[...] += jnp.einsum(
            "bnc,bck->bnk", pooled.astype(mm_dtype), w_ref[...],
            preferred_element_type=jnp.float32)

        # ---- finalize on last C block: folded eval-BN affine + ReLU, K-aligned stores ----
        @pl.when(ci == pl.num_programs(1) - 1)
        def _finalize():
            y = jnp.maximum(acc_ref[...] * scale_ref[...] + shift_ref[...], 0.0)
            for bi in range(nb):                               # 128-wide lane-aligned stores
                out_ref[:, bi * k_out:(bi + 1) * k_out] = y[bi].astype(out_ref.dtype)

    return kernel


@functools.partial(jax.jit, static_argnames=("branches", "num_stripes"))
def pyramid_feats(feat_nchw, conv_w, scale3, shift3, *, branches, num_stripes):
    """feat_nchw: (N, C, H, W) backbone features -> feats (N, num_branches * K)."""
    N, C, H, W = feat_nchw.shape
    nb, _, K = conv_w.shape
    assert H % num_stripes == 0
    basic = H // num_stripes
    HW = H * W

    # FREE reshape (contiguous minor dims merged): no HBM traffic; puts H*W on the lane axis.
    feat3 = feat_nchw.reshape(N, C, HW)

    # --- tiling: whole batch in one block if small; block C so the working set fits VMEM ---
    itemsize = feat_nchw.dtype.itemsize
    if N <= 8:
        n_tile = N
    elif N % 8 == 0:
        n_tile = 8
    else:
        n_tile = N
    feat_block_budget = 8 << 20                     # per-buffer budget for the feature block
    c_tile = C
    for d in range(C, 0, -1):
        if C % d == 0 and (d == C or d % 8 == 0):
            if n_tile * d * HW * itemsize <= feat_block_budget:
                c_tile = d
                break
    grid = (N // n_tile, C // c_tile)

    # Explicit scoped-VMEM request (v5e default is 16 MiB; stay under v7x's 64 MiB physical).
    est_bytes = (2 * n_tile * c_tile * HW * itemsize             # feature double buffer
                 + 2 * nb * c_tile * K * conv_w.dtype.itemsize   # weight double buffer
                 + 4 * nb * K * 4                                # scale / shift
                 + 2 * n_tile * nb * K * 4                       # output block
                 + nb * n_tile * K * 4)                          # accumulator scratch
    vmem_limit = int(min(max(2 * est_bytes, 32 << 20), 56 << 20))

    kernel = _make_pyramid_kernel(branches, basic, W, num_stripes, nb, K, conv_w.dtype)

    return pl.pallas_call(
        kernel,
        out_shape=jax.ShapeDtypeStruct((N, nb * K), jnp.float32),
        grid_spec=pltpu.PrefetchScalarGridSpec(
            num_scalar_prefetch=0,
            grid=grid,
            in_specs=[
                # Feature map consumed directly in (N, C, H*W) layout, blocked over N and C.
                pl.BlockSpec((n_tile, c_tile, HW), lambda n, c: (n, c, 0)),
                # Branch weights blocked along the contraction (C) axis.
                pl.BlockSpec((nb, c_tile, K), lambda n, c: (0, c, 0)),
                # Folded-BN affine: small, constant-index, stays resident.
                pl.BlockSpec((nb, 1, K), lambda n, c: (0, 0, 0)),
                pl.BlockSpec((nb, 1, K), lambda n, c: (0, 0, 0)),
            ],
            out_specs=pl.BlockSpec((n_tile, nb * K), lambda n, c: (n, 0)),
            scratch_shapes=[
                pltpu.VMEM((nb, n_tile, K), jnp.float32),   # head accumulator across C blocks
            ],
        ),
        compiler_params=pltpu.CompilerParams(
            # N blocks are independent (-> v7x megacore); the C axis accumulates into the
            # scratch / resident output block so it must stay "arbitrary".
            dimension_semantics=("parallel", "arbitrary"),
            vmem_limit_bytes=vmem_limit,
        ),
    )(feat3, conv_w, scale3, shift3)


if __name__ == "__main__":
    # Small shapes consistent with the module: the kernel consumes the backbone feature map.
    N, C, H, W = 2, 32, 16, 8
    num_stripes = 4
    used_levels = [1, 1, 1, 1, 1, 1]
    K = 128                        # num_conv_out_channels

    # Branch bookkeeping identical to Pyramid.register_basic_branch / pyramid_forward,
    # expressed in units of basic stripes: (start_basic_stripe, num_basic_stripes).
    num_in_each_level = list(range(num_stripes, 0, -1))      # [4, 3, 2, 1]
    branches = []
    idx_levels = 0
    for idx_branches in range(sum(num_in_each_level)):
        if idx_branches >= sum(num_in_each_level[: idx_levels + 1]):
            idx_levels += 1
        if used_levels[idx_levels] == 0:
            continue
        idx_in_level = idx_branches - sum(num_in_each_level[:idx_levels])
        branches.append((int(idx_in_level), int(idx_levels + 1)))
    branches = tuple(branches)
    nb = len(branches)
    assert H % num_stripes == 0
    basic = H // num_stripes

    # Deterministic synthetic parameters (Conv2d 1x1 weight/bias per branch + eval BatchNorm).
    key = jax.random.PRNGKey(0)
    k_feat, k_w, k_b, k_g, k_be, k_m, k_v = jax.random.split(key, 7)
    feat_nchw = jax.random.normal(k_feat, (N, C, H, W), dtype=jnp.float32)
    conv_w = jax.random.normal(k_w, (nb, C, K), dtype=jnp.float32) * 0.05   # (K,C,1,1) -> (C,K)
    conv_b = jax.random.normal(k_b, (nb, K), dtype=jnp.float32) * 0.01
    gamma = 0.5 + jax.random.uniform(k_g, (nb, K), dtype=jnp.float32)
    beta = jax.random.normal(k_be, (nb, K), dtype=jnp.float32) * 0.1
    run_mean = jax.random.normal(k_m, (nb, K), dtype=jnp.float32) * 0.1
    run_var = 0.5 + jax.random.uniform(k_v, (nb, K), dtype=jnp.float32)
    eps = 1e-5

    # Fold conv-bias + eval BatchNorm into a single per-channel affine after the matmul.
    scale = gamma / jnp.sqrt(run_var + eps)                  # (nb, K)
    shift = scale * (conv_b - run_mean) + beta               # (nb, K)
    scale3 = scale.reshape(nb, 1, K)
    shift3 = shift.reshape(nb, 1, K)

    out = pyramid_feats(feat_nchw, conv_w, scale3, shift3,
                        branches=branches, num_stripes=num_stripes)
    out = jax.block_until_ready(out)

    # Pure-JAX reference (same semantics as Pyramid.pyramid_forward, eval mode) on NCHW.
    ref_parts = []
    for bi, (st_s, n_s) in enumerate(branches):
        st = st_s * basic
        ln = n_s * basic
        sl = feat_nchw[:, :, st:st + ln, :]
        pooled = jnp.mean(sl, axis=(2, 3)) + jnp.max(sl, axis=(2, 3))
        y = pooled @ conv_w[bi]
        y = y * scale[bi] + shift[bi]
        ref_parts.append(jnp.maximum(y, 0.0))
    ref = jnp.concatenate(ref_parts, axis=1)

    assert out.shape == (N, nb * K), out.shape
    assert jnp.allclose(out, ref, atol=2e-4, rtol=2e-4), float(jnp.max(jnp.abs(out - ref)))
    print("KERNEL_OK")
</pallas_src>

<mosaic_0001>
module attributes {stable_mosaic.version = 11 : i64} {
  func.func @kernel(%arg0: i32, %arg1: i32, %arg2: memref<2x32x128xf32, #tpu.memory_space<vmem>>, %arg3: memref<10x32x128xf32, #tpu.memory_space<vmem>>, %arg4: memref<10x1x128xf32, #tpu.memory_space<vmem>>, %arg5: memref<10x1x128xf32, #tpu.memory_space<vmem>>, %arg6: memref<2x1280xf32, #tpu.memory_space<vmem>>, %arg7: memref<10x2x128xf32, #tpu.memory_space<vmem>>) attributes {dimension_semantics = [#tpu.dimension_semantics<parallel>, #tpu.dimension_semantics<arbitrary>], iteration_bounds = array<i64: 1, 1>, scalar_prefetch = 0 : i64, scratch_operands = 1 : i64, tpu.core_type = #tpu.core_type<tc>, window_params = [{transform_indices = @transform_0, window_bounds = array<i64: 2, 32, 128>}, {transform_indices = @transform_1, window_bounds = array<i64: 10, 32, 128>}, {pipeline_mode = #tpu.pipeline_mode<synchronous>, transform_indices = @transform_2, window_bounds = array<i64: 10, 1, 128>}, {pipeline_mode = #tpu.pipeline_mode<synchronous>, transform_indices = @transform_3, window_bounds = array<i64: 10, 1, 128>}, {transform_indices = @transform_4, window_bounds = array<i64: 2, 1280>}]} {
    %c0_i32 = arith.constant 0 : i32
    %0 = arith.cmpi eq, %arg1, %c0_i32 : i32
    %1 = arith.extui %0 : i1 to i32
    %c0_i32_0 = arith.constant 0 : i32
    %2 = arith.cmpi ne, %1, %c0_i32_0 : i32
    scf.if %2 {
      %cst_38 = arith.constant 0.000000e+00 : f32
      %76 = vector.broadcast %cst_38 : f32 to vector<10x2x128xf32>
      %c0_39 = arith.constant 0 : index
      %c0_40 = arith.constant 0 : index
      %c0_41 = arith.constant 0 : index
      %77 = vector.load %arg7[%c0_39, %c0_40, %c0_41] : memref<10x2x128xf32, #tpu.memory_space<vmem>>, vector<10x2x128xf32>
      tpu.vector_store %arg7[%c0_39, %c0_40, %c0_41], %76 {strides = array<i32>} : memref<10x2x128xf32, #tpu.memory_space<vmem>>, vector<10x2x128xf32>,
    } else {
    }
    %c0 = arith.constant 0 : index
    %c0_1 = arith.constant 0 : index
    %c0_2 = arith.constant 0 : index
    %3 = vector.load %arg2[%c0, %c0_1, %c0_2] : memref<2x32x128xf32, #tpu.memory_space<vmem>>, vector<2x32x32xf32>
    %cst = arith.constant dense<0.000000e+00> : vector<2x32xf32>
    %4 = vector.multi_reduction <add>, %3, %cst [2] : vector<2x32x32xf32> to vector<2x32xf32>
    %cst_3 = arith.constant dense<0xFF800000> : vector<2x32xf32>
    %5 = vector.multi_reduction <maximumf>, %3, %cst_3 [2] : vector<2x32x32xf32> to vector<2x32xf32>
    %c0_4 = arith.constant 0 : index
    %c0_5 = arith.constant 0 : index
    %c32 = arith.constant 32 : index
    %6 = vector.load %arg2[%c0_4, %c0_5, %c32] : memref<2x32x128xf32, #tpu.memory_space<vmem>>, vector<2x32x32xf32>
    %cst_6 = arith.constant dense<0.000000e+00> : vector<2x32xf32>
    %7 = vector.multi_reduction <add>, %6, %cst_6 [2] : vector<2x32x32xf32> to vector<2x32xf32>
    %cst_7 = arith.constant dense<0xFF800000> : vector<2x32xf32>
    %8 = vector.multi_reduction <maximumf>, %6, %cst_7 [2] : vector<2x32x32xf32> to vector<2x32xf32>
    %c0_8 = arith.constant 0 : index
    %c0_9 = arith.constant 0 : index
    %c64 = arith.constant 64 : index
    %9 = vector.load %arg2[%c0_8, %c0_9, %c64] : memref<2x32x128xf32, #tpu.memory_space<vmem>>, vector<2x32x32xf32>
    %cst_10 = arith.constant dense<0.000000e+00> : vector<2x32xf32>
    %10 = vector.multi_reduction <add>, %9, %cst_10 [2] : vector<2x32x32xf32> to vector<2x32xf32>
    %cst_11 = arith.constant dense<0xFF800000> : vector<2x32xf32>
    %11 = vector.multi_reduction <maximumf>, %9, %cst_11 [2] : vector<2x32x32xf32> to vector<2x32xf32>
    %c0_12 = arith.constant 0 : index
    %c0_13 = arith.constant 0 : index
    %c96 = arith.constant 96 : index
    %12 = vector.load %arg2[%c0_12, %c0_13, %c96] : memref<2x32x128xf32, #tpu.memory_space<vmem>>, vector<2x32x32xf32>
    %cst_14 = arith.constant dense<0.000000e+00> : vector<2x32xf32>
    %13 = vector.multi_reduction <add>, %12, %cst_14 [2] : vector<2x32x32xf32> to vector<2x32xf32>
    %cst_15 = arith.constant dense<0xFF800000> : vector<2x32xf32>
    %14 = vector.multi_reduction <maximumf>, %12, %cst_15 [2] : vector<2x32x32xf32> to vector<2x32xf32>
    %cst_16 = arith.constant 3.125000e-02 : f32
    %15 = vector.broadcast %cst_16 : f32 to vector<2x32xf32>
    %16 = arith.mulf %4, %15 : vector<2x32xf32>
    %17 = arith.addf %16, %5 : vector<2x32xf32>
    %cst_17 = arith.constant 3.125000e-02 : f32
    %18 = vector.broadcast %cst_17 : f32 to vector<2x32xf32>
    %19 = arith.mulf %7, %18 : vector<2x32xf32>
    %20 = arith.addf %19, %8 : vector<2x32xf32>
    %cst_18 = arith.constant 3.125000e-02 : f32
    %21 = vector.broadcast %cst_18 : f32 to vector<2x32xf32>
    %22 = arith.mulf %10, %21 : vector<2x32xf32>
    %23 = arith.addf %22, %11 : vector<2x32xf32>
    %cst_19 = arith.constant 3.125000e-02 : f32
    %24 = vector.broadcast %cst_19 : f32 to vector<2x32xf32>
    %25 = arith.mulf %13, %24 : vector<2x32xf32>
    %26 = arith.addf %25, %14 : vector<2x32xf32>
    %27 = arith.addf %4, %7 : vector<2x32xf32>
    %28 = arith.maximumf %5, %8 : vector<2x32xf32>
    %cst_20 = arith.constant 1.562500e-02 : f32
    %29 = vector.broadcast %cst_20 : f32 to vector<2x32xf32>
    %30 = arith.mulf %27, %29 : vector<2x32xf32>
    %31 = arith.addf %30, %28 : vector<2x32xf32>
    %32 = arith.addf %7, %10 : vector<2x32xf32>
    %33 = arith.maximumf %8, %11 : vector<2x32xf32>
    %cst_21 = arith.constant 1.562500e-02 : f32
    %34 = vector.broadcast %cst_21 : f32 to vector<2x32xf32>
    %35 = arith.mulf %32, %34 : vector<2x32xf32>
    %36 = arith.addf %35, %33 : vector<2x32xf32>
    %37 = arith.addf %10, %13 : vector<2x32xf32>
    %38 = arith.maximumf %11, %14 : vector<2x32xf32>
    %cst_22 = arith.constant 1.562500e-02 : f32
    %39 = vector.broadcast %cst_22 : f32 to vector<2x32xf32>
    %40 = arith.mulf %37, %39 : vector<2x32xf32>
    %41 = arith.addf %40, %38 : vector<2x32xf32>
    %42 = arith.addf %27, %10 : vector<2x32xf32>
    %43 = arith.maximumf %28, %11 : vector<2x32xf32>
    %cst_23 = arith.constant 0.010416667 : f32
    %44 = vector.broadcast %cst_23 : f32 to vector<2x32xf32>
    %45 = arith.mulf %42, %44 : vector<2x32xf32>
    %46 = arith.addf %45, %43 : vector<2x32xf32>
    %47 = arith.addf %32, %13 : vector<2x32xf32>
    %48 = arith.maximumf %33, %14 : vector<2x32xf32>
    %cst_24 = arith.constant 0.010416667 : f32
    %49 = vector.broadcast %cst_24 : f32 to vector<2x32xf32>
    %50 = arith.mulf %47, %49 : vector<2x32xf32>
    %51 = arith.addf %50, %48 : vector<2x32xf32>
    %52 = arith.addf %42, %13 : vector<2x32xf32>
    %53 = arith.maximumf %43, %14 : vector<2x32xf32>
    %cst_25 = arith.constant 7.812500e-03 : f32
    %54 = vector.broadcast %cst_25 : f32 to vector<2x32xf32>
    %55 = arith.mulf %52, %54 : vector<2x32xf32>
    %56 = arith.addf %55, %53 : vector<2x32xf32>
    %57 = vector.shape_cast %17 : vector<2x32xf32> to vector<1x2x32xf32>
    %58 = vector.shape_cast %20 : vector<2x32xf32> to vector<1x2x32xf32>
    %59 = vector.shape_cast %23 : vector<2x32xf32> to vector<1x2x32xf32>
    %60 = vector.shape_cast %26 : vector<2x32xf32> to vector<1x2x32xf32>
    %61 = vector.shape_cast %31 : vector<2x32xf32> to vector<1x2x32xf32>
    %62 = vector.shape_cast %36 : vector<2x32xf32> to vector<1x2x32xf32>
    %63 = vector.shape_cast %41 : vector<2x32xf32> to vector<1x2x32xf32>
    %64 = vector.shape_cast %46 : vector<2x32xf32> to vector<1x2x32xf32>
    %65 = vector.shape_cast %51 : vector<2x32xf32> to vector<1x2x32xf32>
    %66 = vector.shape_cast %56 : vector<2x32xf32> to vector<1x2x32xf32>
    %67 = tpu.concatenate %57, %58, %59, %60, %61, %62, %63, %64, %65, %66 in 0 : vector<1x2x32xf32>, vector<1x2x32xf32>, vector<1x2x32xf32>, vector<1x2x32xf32>, vector<1x2x32xf32>, vector<1x2x32xf32>, vector<1x2x32xf32>, vector<1x2x32xf32>, vector<1x2x32xf32>, vector<1x2x32xf32> -> vector<10x2x32xf32>
    %c0_26 = arith.constant 0 : index
    %c0_27 = arith.constant 0 : index
    %c0_28 = arith.constant 0 : index
    %68 = vector.load %arg7[%c0_26, %c0_27, %c0_28] : memref<10x2x128xf32, #tpu.memory_space<vmem>>, vector<10x2x128xf32>
    %c0_29 = arith.constant 0 : index
    %c0_30 = arith.constant 0 : index
    %c0_31 = arith.constant 0 : index
    %69 = vector.load %arg3[%c0_29, %c0_30, %c0_31] : memref<10x32x128xf32, #tpu.memory_space<vmem>>, vector<10x32x128xf32>
    "tpu.trace_start"() <{level = 10 : i32, message = "bnc,bck->bnk"}> : () -> ()
    %cst_32 = arith.constant dense<0.000000e+00> : vector<10x2x128xf32>
    %70 = tpu.matmul %67, %69, %cst_32 {dimension_numbers = #tpu.dot_dimension_numbers<[2], [1], [1], [2], [0, 0, 0, 1, 1, 2], [0], [0]>} : vector<10x2x32xf32>, vector<10x32x128xf32>, vector<10x2x128xf32> -> vector<10x2x128xf32>
    "tpu.trace_stop"() : () -> ()
    %71 = arith.addf %68, %70 : vector<10x2x128xf32>
    %c0_33 = arith.constant 0 : index
    %c0_34 = arith.constant 0 : index
    %c0_35 = arith.constant 0 : index
    %72 = vector.load %arg7[%c0_33, %c0_34, %c0_35] : memref<10x2x128xf32, #tpu.memory_space<vmem>>, vector<10x2x128xf32>
    tpu.vector_store %arg7[%c0_33, %c0_34, %c0_35], %71 {strides = array<i32>} : memref<10x2x128xf32, #tpu.memory_space<vmem>>, vector<10x2x128xf32>,
    %c0_i32_36 = arith.constant 0 : i32
    %73 = arith.cmpi eq, %arg1, %c0_i32_36 : i32
    %74 = arith.extui %73 : i1 to i32
    %c0_i32_37 = arith.constant 0 : i32
    %75 = arith.cmpi ne, %74, %c0_i32_37 : i32
    scf.if %75 {
      %c0_38 = arith.constant 0 : index
      %c0_39 = arith.constant 0 : index
      %c0_40 = arith.constant 0 : index
      %76 = vector.load %arg7[%c0_38, %c0_39, %c0_40] : memref<10x2x128xf32, #tpu.memory_space<vmem>>, vector<10x2x128xf32>
      %c0_41 = arith.constant 0 : index
      %c0_42 = arith.constant 0 : index
      %c0_43 = arith.constant 0 : index
      %77 = vector.load %arg4[%c0_41, %c0_42, %c0_43] : memref<10x1x128xf32, #tpu.memory_space<vmem>>, vector<10x1x128xf32>
      %78 = vector.broadcast %77 : vector<10x1x128xf32> to vector<10x2x128xf32>
      %79 = arith.mulf %76, %78 : vector<10x2x128xf32>
      %c0_44 = arith.constant 0 : index
      %c0_45 = arith.constant 0 : index
      %c0_46 = arith.constant 0 : index
      %80 = vector.load %arg5[%c0_44, %c0_45, %c0_46] : memref<10x1x128xf32, #tpu.memory_space<vmem>>, vector<10x1x128xf32>
      %81 = vector.broadcast %80 : vector<10x1x128xf32> to vector<10x2x128xf32>
      %82 = arith.addf %79, %81 : vector<10x2x128xf32>
      %cst_47 = arith.constant 0.000000e+00 : f32
      %83 = vector.broadcast %cst_47 : f32 to vector<10x2x128xf32>
      %84 = arith.maximumf %82, %83 : vector<10x2x128xf32>
      %85 = vector.extract_strided_slice %84 {offsets = [0, 0, 0], sizes = [1, 2, 128], strides = [1, 1, 1]} : vector<10x2x128xf32> to vector<1x2x128xf32>
      %86 = vector.shape_cast %85 : vector<1x2x128xf32> to vector<2x128xf32>
      %c0_48 = arith.constant 0 : index
      %c0_49 = arith.constant 0 : index
      %87 = vector.load %arg6[%c0_48, %c0_49] : memref<2x1280xf32, #tpu.memory_space<vmem>>, vector<2x128xf32>
      tpu.vector_store %arg6[%c0_48, %c0_49], %86 {strides = array<i32>} : memref<2x1280xf32, #tpu.memory_space<vmem>>, vector<2x128xf32>,
      %88 = vector.extract_strided_slice %84 {offsets = [1, 0, 0], sizes = [1, 2, 128], strides = [1, 1, 1]} : vector<10x2x128xf32> to vector<1x2x128xf32>
      %89 = vector.shape_cast %88 : vector<1x2x128xf32> to vector<2x128xf32>
      %c0_50 = arith.constant 0 : index
      %c128 = arith.constant 128 : index
      %90 = vector.load %arg6[%c0_50, %c128] : memref<2x1280xf32, #tpu.memory_space<vmem>>, vector<2x128xf32>
      tpu.vector_store %arg6[%c0_50, %c128], %89 {strides = array<i32>} : memref<2x1280xf32, #tpu.memory_space<vmem>>, vector<2x128xf32>,
      %91 = vector.extract_strided_slice %84 {offsets = [2, 0, 0], sizes = [1, 2, 128], strides = [1, 1, 1]} : vector<10x2x128xf32> to vector<1x2x128xf32>
      %92 = vector.shape_cast %91 : vector<1x2x128xf32> to vector<2x128xf32>
      %c0_51 = arith.constant 0 : index
      %c256 = arith.constant 256 : index
      %93 = vector.load %arg6[%c0_51, %c256] : memref<2x1280xf32, #tpu.memory_space<vmem>>, vector<2x128xf32>
      tpu.vector_store %arg6[%c0_51, %c256], %92 {strides = array<i32>} : memref<2x1280xf32, #tpu.memory_space<vmem>>, vector<2x128xf32>,
      %94 = vector.extract_strided_slice %84 {offsets = [3, 0, 0], sizes = [1, 2, 128], strides = [1, 1, 1]} : vector<10x2x128xf32> to vector<1x2x128xf32>
      %95 = vector.shape_cast %94 : vector<1x2x128xf32> to vector<2x128xf32>
      %c0_52 = arith.constant 0 : index
      %c384 = arith.constant 384 : index
      %96 = vector.load %arg6[%c0_52, %c384] : memref<2x1280xf32, #tpu.memory_space<vmem>>, vector<2x128xf32>
      tpu.vector_store %arg6[%c0_52, %c384], %95 {strides = array<i32>} : memref<2x1280xf32, #tpu.memory_space<vmem>>, vector<2x128xf32>,
      %97 = vector.extract_strided_slice %84 {offsets = [4, 0, 0], sizes = [1, 2, 128], strides = [1, 1, 1]} : vector<10x2x128xf32> to vector<1x2x128xf32>
      %98 = vector.shape_cast %97 : vector<1x2x128xf32> to vector<2x128xf32>
      %c0_53 = arith.constant 0 : index
      %c512 = arith.constant 512 : index
      %99 = vector.load %arg6[%c0_53, %c512] : memref<2x1280xf32, #tpu.memory_space<vmem>>, vector<2x128xf32>
      tpu.vector_store %arg6[%c0_53, %c512], %98 {strides = array<i32>} : memref<2x1280xf32, #tpu.memory_space<vmem>>, vector<2x128xf32>,
      %100 = vector.extract_strided_slice %84 {offsets = [5, 0, 0], sizes = [1, 2, 128], strides = [1, 1, 1]} : vector<10x2x128xf32> to vector<1x2x128xf32>
      %101 = vector.shape_cast %100 : vector<1x2x128xf32> to vector<2x128xf32>
      %c0_54 = arith.constant 0 : index
      %c640 = arith.constant 640 : index
      %102 = vector.load %arg6[%c0_54, %c640] : memref<2x1280xf32, #tpu.memory_space<vmem>>, vector<2x128xf32>
      tpu.vector_store %arg6[%c0_54, %c640], %101 {strides = array<i32>} : memref<2x1280xf32, #tpu.memory_space<vmem>>, vector<2x128xf32>,
      %103 = vector.extract_strided_slice %84 {offsets = [6, 0, 0], sizes = [1, 2, 128], strides = [1, 1, 1]} : vector<10x2x128xf32> to vector<1x2x128xf32>
      %104 = vector.shape_cast %103 : vector<1x2x128xf32> to vector<2x128xf32>
      %c0_55 = arith.constant 0 : index
      %c768 = arith.constant 768 : index
      %105 = vector.load %arg6[%c0_55, %c768] : memref<2x1280xf32, #tpu.memory_space<vmem>>, vector<2x128xf32>
      tpu.vector_store %arg6[%c0_55, %c768], %104 {strides = array<i32>} : memref<2x1280xf32, #tpu.memory_space<vmem>>, vector<2x128xf32>,
      %106 = vector.extract_strided_slice %84 {offsets = [7, 0, 0], sizes = [1, 2, 128], strides = [1, 1, 1]} : vector<10x2x128xf32> to vector<1x2x128xf32>
      %107 = vector.shape_cast %106 : vector<1x2x128xf32> to vector<2x128xf32>
      %c0_56 = arith.constant 0 : index
      %c896 = arith.constant 896 : index
      %108 = vector.load %arg6[%c0_56, %c896] : memref<2x1280xf32, #tpu.memory_space<vmem>>, vector<2x128xf32>
      tpu.vector_store %arg6[%c0_56, %c896], %107 {strides = array<i32>} : memref<2x1280xf32, #tpu.memory_space<vmem>>, vector<2x128xf32>,
      %109 = vector.extract_strided_slice %84 {offsets = [8, 0, 0], sizes = [1, 2, 128], strides = [1, 1, 1]} : vector<10x2x128xf32> to vector<1x2x128xf32>
      %110 = vector.shape_cast %109 : vector<1x2x128xf32> to vector<2x128xf32>
      %c0_57 = arith.constant 0 : index
      %c1024 = arith.constant 1024 : index
      %111 = vector.load %arg6[%c0_57, %c1024] : memref<2x1280xf32, #tpu.memory_space<vmem>>, vector<2x128xf32>
      tpu.vector_store %arg6[%c0_57, %c1024], %110 {strides = array<i32>} : memref<2x1280xf32, #tpu.memory_space<vmem>>, vector<2x128xf32>,
      %112 = vector.extract_strided_slice %84 {offsets = [9, 0, 0], sizes = [1, 2, 128], strides = [1, 1, 1]} : vector<10x2x128xf32> to vector<1x2x128xf32>
      %113 = vector.shape_cast %112 : vector<1x2x128xf32> to vector<2x128xf32>
      %c0_58 = arith.constant 0 : index
      %c1152 = arith.constant 1152 : index
      %114 = vector.load %arg6[%c0_58, %c1152] : memref<2x1280xf32, #tpu.memory_space<vmem>>, vector<2x128xf32>
      tpu.vector_store %arg6[%c0_58, %c1152], %113 {strides = array<i32>} : memref<2x1280xf32, #tpu.memory_space<vmem>>, vector<2x128xf32>,
    } else {
    }
    return
  }
  func.func @transform_0(%arg0: i32, %arg1: i32) -> (i32, i32, i32) {
    %c0_i32 = arith.constant 0 : i32
    %c0_i32_0 = arith.constant 0 : i32
    return %arg0, %arg1, %c0_i32 : i32, i32, i32
  }
  func.func @transform_1(%arg0: i32, %arg1: i32) -> (i32, i32, i32) {
    %c0_i32 = arith.constant 0 : i32
    %c0_i32_0 = arith.constant 0 : i32
    %c0_i32_1 = arith.constant 0 : i32
    return %c0_i32, %arg1, %c0_i32_0 : i32, i32, i32
  }
  func.func @transform_2(%arg0: i32, %arg1: i32) -> (i32, i32, i32) {
    %c0_i32 = arith.constant 0 : i32
    %c0_i32_0 = arith.constant 0 : i32
    %c0_i32_1 = arith.constant 0 : i32
    %c0_i32_2 = arith.constant 0 : i32
    return %c0_i32, %c0_i32_0, %c0_i32_1 : i32, i32, i32
  }
  func.func @transform_3(%arg0: i32, %arg1: i32) -> (i32, i32, i32) {
    %c0_i32 = arith.constant 0 : i32
    %c0_i32_0 = arith.constant 0 : i32
    %c0_i32_1 = arith.constant 0 : i32
    %c0_i32_2 = arith.constant 0 : i32
    return %c0_i32, %c0_i32_0, %c0_i32_1 : i32, i32, i32
  }
  func.func @transform_4(%arg0: i32, %arg1: i32) -> (i32, i32) {
    %c0_i32 = arith.constant 0 : i32
    %c0_i32_0 = arith.constant 0 : i32
    return %arg0, %c0_i32 : i32, i32
  }
}

</mosaic_0001>

<llo_original>
// kernel: pyramid_feats.1
$region0: #{pyramid_feats.1}
  #allocation0 [shape = 'u32[]', space=smem, size = 0x4, offset = 0x4, fixed_abs, tag = 'smem constant byte address 0x4 - core index']
  #allocation1 [shape = 'u32[144,128]{1,0:T(1,128)}', space=vmem, size = 0x12000, scoped, tag = 'internal scratch']
  #allocation2 [shape = 'f32[10,2,128]{2,1,0:T(2,128)}', space=vmem, size = 0x2800, scoped, tag = 'scratch operand']
  %s0 = inlined_call_operand.vmem [shape: f32[2,32,128], index: 0, kind: input, shape index: {}]
  %s1 = inlined_call_operand.vmem [shape: f32[10,32,128], index: 1, kind: input, shape index: {}]
  %s2 = inlined_call_operand.vmem [shape: f32[10,1,128], index: 2, kind: input, shape index: {}]
  %s3 = inlined_call_operand.hbm [shape: f32[10,1,128], index: 3, kind: input, shape index: {}]
  %s4 = inlined_call_operand.hbm [shape: f32[2,1280], index: 4, kind: output, shape index: {}]
  %s5 = sld [smem:[#allocation0]]
  $region38: #{pyramid_feats.1} parent=0
    _
  %s7 = ssub.s32 1, %s5
  %s8 = scalar_select 0, %s7, %s5
  $region1: #{pyramid_feats.1} parent=0
    #allocation3 [shape = 'u8[5120]{0}', space=vmem, size = 0x1400, scoped, tag = 'input window, operand 3, single buffered']
    #allocation4 [shape = 's32[1]{0}', space=sflag, size = 0x4, scoped, tag = 'scoped memory for pyramid_feats.1']
    #allocation5 [shape = 's32[1]{0}', space=sflag, size = 0x4, scoped, tag = 'scoped memory for pyramid_feats.1']
    #allocation6 [shape = 'u8[10240]{0}', space=vmem, size = 0x2800, scoped, tag = 'output window, operand 0, single buffered']
    %9 = vsyncpa [#allocation4], 0
    %10 = vsyncpa [#allocation5], 0
    // Predicated region
    $region2: #{pyramid_feats.1} parent=1 // pred_check
      _
    $region3: #{pyramid_feats.1} parent=1 // pred_check_branch
      %12 = sbr.rel (0) target = $region5
    $region4: #{pyramid_feats.1} parent=1 // pred_region
      _
    $region5: #{pyramid_feats.1} parent=1 // pred_fallthru
      _
    // Predicated region
    $region6: #{pyramid_feats.1} parent=1 // pred_check
      _
    $region7: #{pyramid_feats.1} parent=1 // pred_check_branch
      %14 = sbr.rel (0) target = $region9
    $region8: #{pyramid_feats.1} parent=1 // pred_region
      _
    $region9: #{pyramid_feats.1} parent=1 // pred_fallthru
      _
    // Predicated region
    $region10: #{pyramid_feats.1} parent=1 // pred_check
      _
    $region11: #{pyramid_feats.1} parent=1 // pred_check_branch
      %16 = sbr.rel (0) target = $region13
    $region12: #{pyramid_feats.1} parent=1 // pred_region
      _
    $region13: #{pyramid_feats.1} parent=1 // pred_fallthru
      _
    // Predicated region
    $region14: #{pyramid_feats.1} parent=1 // pred_check
      _
    $region15: #{pyramid_feats.1} parent=1 // pred_check_branch
      %18 = sbr.rel (0) target = $region17
    $region16: #{pyramid_feats.1} parent=1 // pred_region
      %s20 = ssub.s32 160, 160
      %21 = vsyncadd [#allocation4], %s20
      %s22 = sshll.u32 [#allocation3], 4
      %s23 = int_to_ptr.vmem [resolvable:$true] %s22
      %28 = dma.hbm_to_vmem [thread:$0]  %s3, 160, %s23, [#allocation4], 16, 16, 1
    $region17: #{pyramid_feats.1} parent=1 // pred_fallthru
      _
    // Predicated region
    $region18: #{pyramid_feats.1} parent=1 // pred_check
      _
    $region19: #{pyramid_feats.1} parent=1 // pred_check_branch
      %30 = sbr.rel (0) target = $region21
    $region20: #{pyramid_feats.1} parent=1 // pred_region
      %31 = dma.done [#allocation4], 160
    $region21: #{pyramid_feats.1} parent=1 // pred_fallthru
      _
    %p32 = scmp.eq.s32.totalorder 0, 0
    // Predicated region
    $region22: #{pyramid_feats.1} parent=1 // pred_check
      %p33 = pneg %p32
    $region23: #{pyramid_feats.1} parent=1 // pred_check_branch
      %35 = sbr.rel (%p33) target = $region25
    $region24: #{pyramid_feats.1} parent=1 // pred_region
      %36 = vst [vmem:[#allocation2] sm:$0x3] 0.0
      %37 = vst [vmem:[#allocation2 + $0x2] sm:$0x3] 0.0
      %38 = vst [vmem:[#allocation2 + $0x4] sm:$0x3] 0.0
      %39 = vst [vmem:[#allocation2 + $0x6] sm:$0x3] 0.0
      %40 = vst [vmem:[#allocation2 + $0x8] sm:$0x3] 0.0
      %41 = vst [vmem:[#allocation2 + $0xa] sm:$0x3] 0.0
      %42 = vst [vmem:[#allocation2 + $0xc] sm:$0x3] 0.0
      %43 = vst [vmem:[#allocation2 + $0xe] sm:$0x3] 0.0
      %44 = vst [vmem:[#allocation2 + $0x10] sm:$0x3] 0.0
      %45 = vst [vmem:[#allocation2 + $0x12] sm:$0x3] 0.0
    $region25: #{pyramid_feats.1} parent=1 // pred_fallthru
      _
    %v46 = vld [vmem:[%s0] sm:$0xff]
    %v47 = vld [vmem:[%s0 + $0x8] sm:$0xff]
    %v48 = vld [vmem:[%s0 + $0x10] sm:$0xff]
    %v49 = vld [vmem:[%s0 + $0x18] sm:$0xff]
    %v50 = vld [vmem:[%s0 + $0x20] sm:$0xff]
    %v51 = vld [vmem:[%s0 + $0x28] sm:$0xff]
    %v52 = vld [vmem:[%s0 + $0x30] sm:$0xff]
    %v53 = vld [vmem:[%s0 + $0x38] sm:$0xff]
    %vm54 = vcmask 261120
    %v55 = vsel %vm54, %v46, 0.0
    %56 = vadd.xlane.f32.xlu0 %v55
    %v57 = vpop.xlane.xlu0 %56
    %v58 = vsel %vm54, %v47, 0.0
    %59 = vadd.xlane.f32.xlu0 %v58
    %v60 = vpop.xlane.xlu0 %59
    %v61 = vsel %vm54, %v48, 0.0
    %62 = vadd.xlane.f32.xlu0 %v61
    %v63 = vpop.xlane.xlu0 %62
    %v64 = vsel %vm54, %v49, 0.0
    %65 = vadd.xlane.f32.xlu0 %v64
    %v66 = vpop.xlane.xlu0 %65
    %v67 = vsel %vm54, %v50, 0.0
    %68 = vadd.xlane.f32.xlu0 %v67
    %v69 = vpop.xlane.xlu0 %68
    %v70 = vsel %vm54, %v51, 0.0
    %71 = vadd.xlane.f32.xlu0 %v70
    %v72 = vpop.xlane.xlu0 %71
    %v73 = vsel %vm54, %v52, 0.0
    %74 = vadd.xlane.f32.xlu0 %v73
    %v75 = vpop.xlane.xlu0 %74
    %v76 = vsel %vm54, %v53, 0.0
    %77 = vadd.xlane.f32.xlu0 %v76
    %v78 = vpop.xlane.xlu0 %77
    %v79 = vsel %vm54, %v46, -inf
    %80 = vmax.xlane.f32.xlu0 %v79
    %v81 = vpop.xlane.xlu0 %80
    %v82 = vsel %vm54, %v47, -inf
    %83 = vmax.xlane.f32.xlu0 %v82
    %v84 = vpop.xlane.xlu0 %83
    %v85 = vsel %vm54, %v48, -inf
    %86 = vmax.xlane.f32.xlu0 %v85
    %v87 = vpop.xlane.xlu0 %86
    %v88 = vsel %vm54, %v49, -inf
    %89 = vmax.xlane.f32.xlu0 %v88
    %v90 = vpop.xlane.xlu0 %89
    %v91 = vsel %vm54, %v50, -inf
    %92 = vmax.xlane.f32.xlu0 %v91
    %v93 = vpop.xlane.xlu0 %92
    %v94 = vsel %vm54, %v51, -inf
    %95 = vmax.xlane.f32.xlu0 %v94
    %v96 = vpop.xlane.xlu0 %95
    %v97 = vsel %vm54, %v52, -inf
    %98 = vmax.xlane.f32.xlu0 %v97
    %v99 = vpop.xlane.xlu0 %98
    %v100 = vsel %vm54, %v53, -inf
    %101 = vmax.xlane.f32.xlu0 %v100
    %v102 = vpop.xlane.xlu0 %101
    %111 = vrot.lane.b32.xlu0 %v46, 96
    %v112 = vpop.permute.xlu0 %111
    %113 = vrot.lane.b32.xlu0 %v47, 96
    %v114 = vpop.permute.xlu0 %113
    %115 = vrot.lane.b32.xlu0 %v48, 96
    %v116 = vpop.permute.xlu0 %115
    %117 = vrot.lane.b32.xlu0 %v49, 96
    %v118 = vpop.permute.xlu0 %117
    %119 = vrot.lane.b32.xlu0 %v50, 96
    %v120 = vpop.permute.xlu0 %119
    %121 = vrot.lane.b32.xlu0 %v51, 96
    %v122 = vpop.permute.xlu0 %121
    %123 = vrot.lane.b32.xlu0 %v52, 96
    %v124 = vpop.permute.xlu0 %123
    %125 = vrot.lane.b32.xlu0 %v53, 96
    %v126 = vpop.permute.xlu0 %125
    %v135 = vsel %vm54, %v112, 0.0
    %136 = vadd.xlane.f32.xlu0 %v135
    %v137 = vpop.xlane.xlu0 %136
    %v138 = vsel %vm54, %v114, 0.0
    %139 = vadd.xlane.f32.xlu0 %v138
    %v140 = vpop.xlane.xlu0 %139
    %v141 = vsel %vm54, %v116, 0.0
    %142 = vadd.xlane.f32.xlu0 %v141
    %v143 = vpop.xlane.xlu0 %142
    %v144 = vsel %vm54, %v118, 0.0
    %145 = vadd.xlane.f32.xlu0 %v144
    %v146 = vpop.xlane.xlu0 %145
    %v147 = vsel %vm54, %v120, 0.0
    %148 = vadd.xlane.f32.xlu0 %v147
    %v149 = vpop.xlane.xlu0 %148
    %v150 = vsel %vm54, %v122, 0.0
    %151 = vadd.xlane.f32.xlu0 %v150
    %v152 = vpop.xlane.xlu0 %151
    %v153 = vsel %vm54, %v124, 0.0
    %154 = vadd.xlane.f32.xlu0 %v153
    %v155 = vpop.xlane.xlu0 %154
    %v156 = vsel %vm54, %v126, 0.0
    %157 = vadd.xlane.f32.xlu0 %v156
    %v158 = vpop.xlane.xlu0 %157
    %vm159 = vcmask 523520
    %v160 = vsel %vm159, %v46, -inf
    %161 = vmax.xlane.f32.xlu0 %v160
    %v162 = vpop.xlane.xlu0 %161
    %v163 = vsel %vm159, %v47, -inf
    %164 = vmax.xlane.f32.xlu0 %v163
    %v165 = vpop.xlane.xlu0 %164
    %v166 = vsel %vm159, %v48, -inf
    %167 = vmax.xlane.f32.xlu0 %v166
    %v168 = vpop.xlane.xlu0 %167
    %v169 = vsel %vm159, %v49, -inf
    %170 = vmax.xlane.f32.xlu0 %v169
    %v171 = vpop.xlane.xlu0 %170
    %v172 = vsel %vm159, %v50, -inf
    %173 = vmax.xlane.f32.xlu0 %v172
    %v174 = vpop.xlane.xlu0 %173
    %v175 = vsel %vm159, %v51, -inf
    %176 = vmax.xlane.f32.xlu0 %v175
    %v177 = vpop.xlane.xlu0 %176
    %v178 = vsel %vm159, %v52, -inf
    %179 = vmax.xlane.f32.xlu0 %v178
    %v180 = vpop.xlane.xlu0 %179
    %v181 = vsel %vm159, %v53, -inf
    %182 = vmax.xlane.f32.xlu0 %v181
    %v183 = vpop.xlane.xlu0 %182
    %184 = vrot.lane.b32.xlu0 %v46, 64
    %v185 = vpop.permute.xlu0 %184
    %186 = vrot.lane.b32.xlu0 %v47, 64
    %v187 = vpop.permute.xlu0 %186
    %188 = vrot.lane.b32.xlu0 %v48, 64
    %v189 = vpop.permute.xlu0 %188
    %190 = vrot.lane.b32.xlu0 %v49, 64
    %v191 = vpop.permute.xlu0 %190
    %192 = vrot.lane.b32.xlu0 %v50, 64
    %v193 = vpop.permute.xlu0 %192
    %194 = vrot.lane.b32.xlu0 %v51, 64
    %v195 = vpop.permute.xlu0 %194
    %196 = vrot.lane.b32.xlu0 %v52, 64
    %v197 = vpop.permute.xlu0 %196
    %198 = vrot.lane.b32.xlu0 %v53, 64
    %v199 = vpop.permute.xlu0 %198
    %v208 = vsel %vm54, %v185, 0.0
    %209 = vadd.xlane.f32.xlu0 %v208
    %v210 = vpop.xlane.xlu0 %209
    %v211 = vsel %vm54, %v187, 0.0
    %212 = vadd.xlane.f32.xlu0 %v211
    %v213 = vpop.xlane.xlu0 %212
    %v214 = vsel %vm54, %v189, 0.0
    %215 = vadd.xlane.f32.xlu0 %v214
    %v216 = vpop.xlane.xlu0 %215
    %v217 = vsel %vm54, %v191, 0.0
    %218 = vadd.xlane.f32.xlu0 %v217
    %v219 = vpop.xlane.xlu0 %218
    %v220 = vsel %vm54, %v193, 0.0
    %221 = vadd.xlane.f32.xlu0 %v220
    %v222 = vpop.xlane.xlu0 %221
    %v223 = vsel %vm54, %v195, 0.0
    %224 = vadd.xlane.f32.xlu0 %v223
    %v225 = vpop.xlane.xlu0 %224
    %v226 = vsel %vm54, %v197, 0.0
    %227 = vadd.xlane.f32.xlu0 %v226
    %v228 = vpop.xlane.xlu0 %227
    %v229 = vsel %vm54, %v199, 0.0
    %230 = vadd.xlane.f32.xlu0 %v229
    %v231 = vpop.xlane.xlu0 %230
    %vm232 = vcmask 785920
    %v233 = vsel %vm232, %v46, -inf
    %234 = vmax.xlane.f32.xlu0 %v233
    %v235 = vpop.xlane.xlu0 %234
    %v236 = vsel %vm232, %v47, -inf
    %237 = vmax.xlane.f32.xlu0 %v236
    %v238 = vpop.xlane.xlu0 %237
    %v239 = vsel %vm232, %v48, -inf
    %240 = vmax.xlane.f32.xlu0 %v239
    %v241 = vpop.xlane.xlu0 %240
    %v242 = vsel %vm232, %v49, -inf
    %243 = vmax.xlane.f32.xlu0 %v242
    %v244 = vpop.xlane.xlu0 %243
    %v245 = vsel %vm232, %v50, -inf
    %246 = vmax.xlane.f32.xlu0 %v245
    %v247 = vpop.xlane.xlu0 %246
    %v248 = vsel %vm232, %v51, -inf
    %249 = vmax.xlane.f32.xlu0 %v248
    %v250 = vpop.xlane.xlu0 %249
    %v251 = vsel %vm232, %v52, -inf
    %252 = vmax.xlane.f32.xlu0 %v251
    %v253 = vpop.xlane.xlu0 %252
    %v254 = vsel %vm232, %v53, -inf
    %255 = vmax.xlane.f32.xlu0 %v254
    %v256 = vpop.xlane.xlu0 %255
    %257 = vrot.lane.b32.xlu0 %v46, 32
    %v258 = vpop.permute.xlu0 %257
    %259 = vrot.lane.b32.xlu0 %v47, 32
    %v260 = vpop.permute.xlu0 %259
    %261 = vrot.lane.b32.xlu0 %v48, 32
    %v262 = vpop.permute.xlu0 %261
    %263 = vrot.lane.b32.xlu0 %v49, 32
    %v264 = vpop.permute.xlu0 %263
    %265 = vrot.lane.b32.xlu0 %v50, 32
    %v266 = vpop.permute.xlu0 %265
    %267 = vrot.lane.b32.xlu0 %v51, 32
    %v268 = vpop.permute.xlu0 %267
    %269 = vrot.lane.b32.xlu0 %v52, 32
    %v270 = vpop.permute.xlu0 %269
    %271 = vrot.lane.b32.xlu0 %v53, 32
    %v272 = vpop.permute.xlu0 %271
    %v281 = vsel %vm54, %v258, 0.0
    %282 = vadd.xlane.f32.xlu0 %v281
    %v283 = vpop.xlane.xlu0 %282
    %v284 = vsel %vm54, %v260, 0.0
    %285 = vadd.xlane.f32.xlu0 %v284
    %v286 = vpop.xlane.xlu0 %285
    %v287 = vsel %vm54, %v262, 0.0
    %288 = vadd.xlane.f32.xlu0 %v287
    %v289 = vpop.xlane.xlu0 %288
    %v290 = vsel %vm54, %v264, 0.0
    %291 = vadd.xlane.f32.xlu0 %v290
    %v292 = vpop.xlane.xlu0 %291
    %v293 = vsel %vm54, %v266, 0.0
    %294 = vadd.xlane.f32.xlu0 %v293
    %v295 = vpop.xlane.xlu0 %294
    %v296 = vsel %vm54, %v268, 0.0
    %297 = vadd.xlane.f32.xlu0 %v296
    %v298 = vpop.xlane.xlu0 %297
    %v299 = vsel %vm54, %v270, 0.0
    %300 = vadd.xlane.f32.xlu0 %v299
    %v301 = vpop.xlane.xlu0 %300
    %v302 = vsel %vm54, %v272, 0.0
    %303 = vadd.xlane.f32.xlu0 %v302
    %v304 = vpop.xlane.xlu0 %303
    %vm305 = vcmask 1048320
    %v306 = vsel %vm305, %v46, -inf
    %307 = vmax.xlane.f32.xlu0 %v306
    %v308 = vpop.xlane.xlu0 %307
    %v309 = vsel %vm305, %v47, -inf
    %310 = vmax.xlane.f32.xlu0 %v309
    %v311 = vpop.xlane.xlu0 %310
    %v312 = vsel %vm305, %v48, -inf
    %313 = vmax.xlane.f32.xlu0 %v312
    %v314 = vpop.xlane.xlu0 %313
    %v315 = vsel %vm305, %v49, -inf
    %316 = vmax.xlane.f32.xlu0 %v315
    %v317 = vpop.xlane.xlu0 %316
    %v318 = vsel %vm305, %v50, -inf
    %319 = vmax.xlane.f32.xlu0 %v318
    %v320 = vpop.xlane.xlu0 %319
    %v321 = vsel %vm305, %v51, -inf
    %322 = vmax.xlane.f32.xlu0 %v321
    %v323 = vpop.xlane.xlu0 %322
    %v324 = vsel %vm305, %v52, -inf
    %325 = vmax.xlane.f32.xlu0 %v324
    %v326 = vpop.xlane.xlu0 %325
    %v327 = vsel %vm305, %v53, -inf
    %328 = vmax.xlane.f32.xlu0 %v327
    %v329 = vpop.xlane.xlu0 %328
    %v330 = vmul.f32 %v57, 0.03125
    %v331 = vmul.f32 %v60, 0.03125
    %v332 = vmul.f32 %v63, 0.03125
    %v333 = vmul.f32 %v66, 0.03125
    %v334 = vmul.f32 %v69, 0.03125
    %v335 = vmul.f32 %v72, 0.03125
    %v336 = vmul.f32 %v75, 0.03125
    %v337 = vmul.f32 %v78, 0.03125
    %v338 = vadd.f32 %v330, %v81
    %v339 = vadd.f32 %v331, %v84
    %v340 = vadd.f32 %v332, %v87
    %v341 = vadd.f32 %v333, %v90
    %v342 = vadd.f32 %v334, %v93
    %v343 = vadd.f32 %v335, %v96
    %v344 = vadd.f32 %v336, %v99
    %v345 = vadd.f32 %v337, %v102
    %v346 = vmul.f32 %v137, 0.03125
    %v347 = vmul.f32 %v140, 0.03125
    %v348 = vmul.f32 %v143, 0.03125
    %v349 = vmul.f32 %v146, 0.03125
    %v350 = vmul.f32 %v149, 0.03125
    %v351 = vmul.f32 %v152, 0.03125
    %v352 = vmul.f32 %v155, 0.03125
    %v353 = vmul.f32 %v158, 0.03125
    %v354 = vadd.f32 %v346, %v162
    %v355 = vadd.f32 %v347, %v165
    %v356 = vadd.f32 %v348, %v168
    %v357 = vadd.f32 %v349, %v171
    %v358 = vadd.f32 %v350, %v174
    %v359 = vadd.f32 %v351, %v177
    %v360 = vadd.f32 %v352, %v180
    %v361 = vadd.f32 %v353, %v183
    %v362 = vmul.f32 %v210, 0.03125
    %v363 = vmul.f32 %v213, 0.03125
    %v364 = vmul.f32 %v216, 0.03125
    %v365 = vmul.f32 %v219, 0.03125
    %v366 = vmul.f32 %v222, 0.03125
    %v367 = vmul.f32 %v225, 0.03125
    %v368 = vmul.f32 %v228, 0.03125
    %v369 = vmul.f32 %v231, 0.03125
    %v370 = vadd.f32 %v362, %v235
    %v371 = vadd.f32 %v363, %v238
    %v372 = vadd.f32 %v364, %v241
    %v373 = vadd.f32 %v365, %v244
    %v374 = vadd.f32 %v366, %v247
    %v375 = vadd.f32 %v367, %v250
    %v376 = vadd.f32 %v368, %v253
    %v377 = vadd.f32 %v369, %v256
    %v378 = vmul.f32 %v283, 0.03125
    %v379 = vmul.f32 %v286, 0.03125
    %v380 = vmul.f32 %v289, 0.03125
    %v381 = vmul.f32 %v292, 0.03125
    %v382 = vmul.f32 %v295, 0.03125
    %v383 = vmul.f32 %v298, 0.03125
    %v384 = vmul.f32 %v301, 0.03125
    %v385 = vmul.f32 %v304, 0.03125
    %v386 = vadd.f32 %v378, %v308
    %v387 = vadd.f32 %v379, %v311
    %v388 = vadd.f32 %v380, %v314
    %v389 = vadd.f32 %v381, %v317
    %v390 = vadd.f32 %v382, %v320
    %v391 = vadd.f32 %v383, %v323
    %v392 = vadd.f32 %v384, %v326
    %v393 = vadd.f32 %v385, %v329
    %v394 = vadd.f32 %v57, %v137
    %v395 = vadd.f32 %v60, %v140
    %v396 = vadd.f32 %v63, %v143
    %v397 = vadd.f32 %v66, %v146
    %v398 = vadd.f32 %v69, %v149
    %v399 = vadd.f32 %v72, %v152
    %v400 = vadd.f32 %v75, %v155
    %v401 = vadd.f32 %v78, %v158
    %v402 = vmax.f32 %v81, %v162
    %v403 = vmax.f32 %v84, %v165
    %v404 = vmax.f32 %v87, %v168
    %v405 = vmax.f32 %v90, %v171
    %v406 = vmax.f32 %v93, %v174
    %v407 = vmax.f32 %v96, %v177
    %v408 = vmax.f32 %v99, %v180
    %v409 = vmax.f32 %v102, %v183
    %v410 = vmul.f32 %v394, 0.015625
    %v411 = vmul.f32 %v395, 0.015625
    %v412 = vmul.f32 %v396, 0.015625
    %v413 = vmul.f32 %v397, 0.015625
    %v414 = vmul.f32 %v398, 0.015625
    %v415 = vmul.f32 %v399, 0.015625
    %v416 = vmul.f32 %v400, 0.015625
    %v417 = vmul.f32 %v401, 0.015625
    %v418 = vadd.f32 %v410, %v402
    %v419 = vadd.f32 %v411, %v403
    %v420 = vadd.f32 %v412, %v404
    %v421 = vadd.f32 %v413, %v405
    %v422 = vadd.f32 %v414, %v406
    %v423 = vadd.f32 %v415, %v407
    %v424 = vadd.f32 %v416, %v408
    %v425 = vadd.f32 %v417, %v409
    %v426 = vadd.f32 %v137, %v210
    %v427 = vadd.f32 %v140, %v213
    %v428 = vadd.f32 %v143, %v216
    %v429 = vadd.f32 %v146, %v219
    %v430 = vadd.f32 %v149, %v222
    %v431 = vadd.f32 %v152, %v225
    %v432 = vadd.f32 %v155, %v228
    %v433 = vadd.f32 %v158, %v231
    %v434 = vmax.f32 %v162, %v235
    %v435 = vmax.f32 %v165, %v238
    %v436 = vmax.f32 %v168, %v241
    %v437 = vmax.f32 %v171, %v244
    %v438 = vmax.f32 %v174, %v247
    %v439 = vmax.f32 %v177, %v250
    %v440 = vmax.f32 %v180, %v253
    %v441 = vmax.f32 %v183, %v256
    %v442 = vmul.f32 %v426, 0.015625
    %v443 = vmul.f32 %v427, 0.015625
    %v444 = vmul.f32 %v428, 0.015625
    %v445 = vmul.f32 %v429, 0.015625
    %v446 = vmul.f32 %v430, 0.015625
    %v447 = vmul.f32 %v431, 0.015625
    %v448 = vmul.f32 %v432, 0.015625
    %v449 = vmul.f32 %v433, 0.015625
    %v450 = vadd.f32 %v442, %v434
    %v451 = vadd.f32 %v443, %v435
    %v452 = vadd.f32 %v444, %v436
    %v453 = vadd.f32 %v445, %v437
    %v454 = vadd.f32 %v446, %v438
    %v455 = vadd.f32 %v447, %v439
    %v456 = vadd.f32 %v448, %v440
    %v457 = vadd.f32 %v449, %v441
    %v458 = vadd.f32 %v210, %v283
    %v459 = vadd.f32 %v213, %v286
    %v460 = vadd.f32 %v216, %v289
    %v461 = vadd.f32 %v219, %v292
    %v462 = vadd.f32 %v222, %v295
    %v463 = vadd.f32 %v225, %v298
    %v464 = vadd.f32 %v228, %v301
    %v465 = vadd.f32 %v231, %v304
    %v466 = vmax.f32 %v235, %v308
    %v467 = vmax.f32 %v238, %v311
    %v468 = vmax.f32 %v241, %v314
    %v469 = vmax.f32 %v244, %v317
    %v470 = vmax.f32 %v247, %v320
    %v471 = vmax.f32 %v250, %v323
    %v472 = vmax.f32 %v253, %v326
    %v473 = vmax.f32 %v256, %v329
    %v474 = vmul.f32 %v458, 0.015625
    %v475 = vmul.f32 %v459, 0.015625
    %v476 = vmul.f32 %v460, 0.015625
    %v477 = vmul.f32 %v461, 0.015625
    %v478 = vmul.f32 %v462, 0.015625
    %v479 = vmul.f32 %v463, 0.015625
    %v480 = vmul.f32 %v464, 0.015625
    %v481 = vmul.f32 %v465, 0.015625
    %v482 = vadd.f32 %v474, %v466
    %v483 = vadd.f32 %v475, %v467
    %v484 = vadd.f32 %v476, %v468
    %v485 = vadd.f32 %v477, %v469
    %v486 = vadd.f32 %v478, %v470
    %v487 = vadd.f32 %v479, %v471
    %v488 = vadd.f32 %v480, %v472
    %v489 = vadd.f32 %v481, %v473
    %v490 = vadd.f32 %v394, %v210
    %v491 = vadd.f32 %v395, %v213
    %v492 = vadd.f32 %v396, %v216
    %v493 = vadd.f32 %v397, %v219
    %v494 = vadd.f32 %v398, %v222
    %v495 = vadd.f32 %v399, %v225
    %v496 = vadd.f32 %v400, %v228
    %v497 = vadd.f32 %v401, %v231
    %v498 = vmax.f32 %v402, %v235
    %v499 = vmax.f32 %v403, %v238
    %v500 = vmax.f32 %v404, %v241
    %v501 = vmax.f32 %v405, %v244
    %v502 = vmax.f32 %v406, %v247
    %v503 = vmax.f32 %v407, %v250
    %v504 = vmax.f32 %v408, %v253
    %v505 = vmax.f32 %v409, %v256
    %v506 = vmul.f32 %v490, 0.010416667
    %v507 = vmul.f32 %v491, 0.010416667
    %v508 = vmul.f32 %v492, 0.010416667
    %v509 = vmul.f32 %v493, 0.010416667
    %v510 = vmul.f32 %v494, 0.010416667
    %v511 = vmul.f32 %v495, 0.010416667
    %v512 = vmul.f32 %v496, 0.010416667
    %v513 = vmul.f32 %v497, 0.010416667
    %v514 = vadd.f32 %v506, %v498
    %v515 = vadd.f32 %v507, %v499
    %v516 = vadd.f32 %v508, %v500
    %v517 = vadd.f32 %v509, %v501
    %v518 = vadd.f32 %v510, %v502
    %v519 = vadd.f32 %v511, %v503
    %v520 = vadd.f32 %v512, %v504
    %v521 = vadd.f32 %v513, %v505
    %v522 = vadd.f32 %v426, %v283
    %v523 = vadd.f32 %v427, %v286
    %v524 = vadd.f32 %v428, %v289
    %v525 = vadd.f32 %v429, %v292
    %v526 = vadd.f32 %v430, %v295
    %v527 = vadd.f32 %v431, %v298
    %v528 = vadd.f32 %v432, %v301
    %v529 = vadd.f32 %v433, %v304
    %v530 = vmax.f32 %v434, %v308
    %v531 = vmax.f32 %v435, %v311
    %v532 = vmax.f32 %v436, %v314
    %v533 = vmax.f32 %v437, %v317
    %v534 = vmax.f32 %v438, %v320
    %v535 = vmax.f32 %v439, %v323
    %v536 = vmax.f32 %v440, %v326
    %v537 = vmax.f32 %v441, %v329
    %v538 = vmul.f32 %v522, 0.010416667
    %v539 = vmul.f32 %v523, 0.010416667
    %v540 = vmul.f32 %v524, 0.010416667
    %v541 = vmul.f32 %v525, 0.010416667
    %v542 = vmul.f32 %v526, 0.010416667
    %v543 = vmul.f32 %v527, 0.010416667
    %v544 = vmul.f32 %v528, 0.010416667
    %v545 = vmul.f32 %v529, 0.010416667
    %v546 = vadd.f32 %v538, %v530
    %v547 = vadd.f32 %v539, %v531
    %v548 = vadd.f32 %v540, %v532
    %v549 = vadd.f32 %v541, %v533
    %v550 = vadd.f32 %v542, %v534
    %v551 = vadd.f32 %v543, %v535
    %v552 = vadd.f32 %v544, %v536
    %v553 = vadd.f32 %v545, %v537
    %v554 = vadd.f32 %v490, %v283
    %v555 = vadd.f32 %v491, %v286
    %v556 = vadd.f32 %v492, %v289
    %v557 = vadd.f32 %v493, %v292
    %v558 = vadd.f32 %v494, %v295
    %v559 = vadd.f32 %v495, %v298
    %v560 = vadd.f32 %v496, %v301
    %v561 = vadd.f32 %v497, %v304
    %v562 = vmax.f32 %v498, %v308
    %v563 = vmax.f32 %v499, %v311
    %v564 = vmax.f32 %v500, %v314
    %v565 = vmax.f32 %v501, %v317
    %v566 = vmax.f32 %v502, %v320
    %v567 = vmax.f32 %v503, %v323
    %v568 = vmax.f32 %v504, %v326
    %v569 = vmax.f32 %v505, %v329
    %v570 = vmul.f32 %v554, 0.0078125
    %v571 = vmul.f32 %v555, 0.0078125
    %v572 = vmul.f32 %v556, 0.0078125
    %v573 = vmul.f32 %v557, 0.0078125
    %v574 = vmul.f32 %v558, 0.0078125
    %v575 = vmul.f32 %v559, 0.0078125
    %v576 = vmul.f32 %v560, 0.0078125
    %v577 = vmul.f32 %v561, 0.0078125
    %v578 = vadd.f32 %v570, %v562
    %v579 = vadd.f32 %v571, %v563
    %v580 = vadd.f32 %v572, %v564
    %v581 = vadd.f32 %v573, %v565
    %v582 = vadd.f32 %v574, %v566
    %v583 = vadd.f32 %v575, %v567
    %v584 = vadd.f32 %v576, %v568
    %v585 = vadd.f32 %v577, %v569
    %v586 = vld [vmem:[#allocation2] sm:$0x3]
    %v587 = vld [vmem:[#allocation2 + $0x2] sm:$0x3]
    %v588 = vld [vmem:[#allocation2 + $0x4] sm:$0x3]
    %v589 = vld [vmem:[#allocation2 + $0x6] sm:$0x3]
    %v590 = vld [vmem:[#allocation2 + $0x8] sm:$0x3]
    %v591 = vld [vmem:[#allocation2 + $0xa] sm:$0x3]
    %v592 = vld [vmem:[#allocation2 + $0xc] sm:$0x3]
    %v593 = vld [vmem:[#allocation2 + $0xe] sm:$0x3]
    %v594 = vld [vmem:[#allocation2 + $0x10] sm:$0x3]
    %v595 = vld [vmem:[#allocation2 + $0x12] sm:$0x3]
    %v596 = vld [vmem:[%s1] sm:$0xff]
    %v597 = vld [vmem:[%s1 + $0x8] sm:$0xff]
    %v598 = vld [vmem:[%s1 + $0x10] sm:$0xff]
    %v599 = vld [vmem:[%s1 + $0x18] sm:$0xff]
    %v600 = vld [vmem:[%s1 + $0x20] sm:$0xff]
    %v601 = vld [vmem:[%s1 + $0x28] sm:$0xff]
    %v602 = vld [vmem:[%s1 + $0x30] sm:$0xff]
    %v603 = vld [vmem:[%s1 + $0x38] sm:$0xff]
    %v604 = vld [vmem:[%s1 + $0x40] sm:$0xff]
    %v605 = vld [vmem:[%s1 + $0x48] sm:$0xff]
    %v606 = vld [vmem:[%s1 + $0x50] sm:$0xff]
    %v607 = vld [vmem:[%s1 + $0x58] sm:$0xff]
    %v608 = vld [vmem:[%s1 + $0x60] sm:$0xff]
    %v609 = vld [vmem:[%s1 + $0x68] sm:$0xff]
    %v610 = vld [vmem:[%s1 + $0x70] sm:$0xff]
    %v611 = vld [vmem:[%s1 + $0x78] sm:$0xff]
    %v612 = vld [vmem:[%s1 + $0x80] sm:$0xff]
    %v613 = vld [vmem:[%s1 + $0x88] sm:$0xff]
    %v614 = vld [vmem:[%s1 + $0x90] sm:$0xff]
    %v615 = vld [vmem:[%s1 + $0x98] sm:$0xff]
    %v616 = vld [vmem:[%s1 + $0xa0] sm:$0xff]
    %v617 = vld [vmem:[%s1 + $0xa8] sm:$0xff]
    %v618 = vld [vmem:[%s1 + $0xb0] sm:$0xff]
    %v619 = vld [vmem:[%s1 + $0xb8] sm:$0xff]
    %v620 = vld [vmem:[%s1 + $0xc0] sm:$0xff]
    %v621 = vld [vmem:[%s1 + $0xc8] sm:$0xff]
    %v622 = vld [vmem:[%s1 + $0xd0] sm:$0xff]
    %v623 = vld [vmem:[%s1 + $0xd8] sm:$0xff]
    %v624 = vld [vmem:[%s1 + $0xe0] sm:$0xff]
    %v625 = vld [vmem:[%s1 + $0xe8] sm:$0xff]
    %v626 = vld [vmem:[%s1 + $0xf0] sm:$0xff]
    %v627 = vld [vmem:[%s1 + $0xf8] sm:$0xff]
    %v628 = vld [vmem:[%s1 + $0x100] sm:$0xff]
    %v629 = vld [vmem:[%s1 + $0x108] sm:$0xff]
    %v630 = vld [vmem:[%s1 + $0x110] sm:$0xff]
    %v631 = vld [vmem:[%s1 + $0x118] sm:$0xff]
    %v632 = vld [vmem:[%s1 + $0x120] sm:$0xff]
    %v633 = vld [vmem:[%s1 + $0x128] sm:$0xff]
    %v634 = vld [vmem:[%s1 + $0x130] sm:$0xff]
    %v635 = vld [vmem:[%s1 + $0x138] sm:$0xff]
    %644 = vset.pattern.permute.xlu0 0
    %645 = vperm.xlu0 %644, %v338
    %v646 = vpop.permute.xlu0 %645
    %647 = vset.pattern.permute.xlu0 0
    %648 = vperm.xlu0 %647, %v339
    %v649 = vpop.permute.xlu0 %648
    %650 = vset.pattern.permute.xlu0 0
    %651 = vperm.xlu0 %650, %v340
    %v652 = vpop.permute.xlu0 %651
    %653 = vset.pattern.permute.xlu0 0
    %654 = vperm.xlu0 %653, %v341
    %v655 = vpop.permute.xlu0 %654
    %656 = vset.pattern.permute.xlu0 0
    %657 = vperm.xlu0 %656, %v342
    %v658 = vpop.permute.xlu0 %657
    %659 = vset.pattern.permute.xlu0 0
    %660 = vperm.xlu0 %659, %v343
    %v661 = vpop.permute.xlu0 %660
    %662 = vset.pattern.permute.xlu0 0
    %663 = vperm.xlu0 %662, %v344
    %v664 = vpop.permute.xlu0 %663
    %665 = vset.pattern.permute.xlu0 0
    %666 = vperm.xlu0 %665, %v345
    %v667 = vpop.permute.xlu0 %666
    %v668 = vlaneseq
    %v669 = vand.u32 %v668, 127
    %v670 = vlaneseq
    %v671 = vshrl.u32 %v670, 7
    %v672 = vsub.s32 %v669, %v671
    %v673 = vrot.slane %v646, %v672
    %v674 = vadd.s32 %v669, 4294967288
    %v675 = vlaneseq
    %v676 = vshrl.u32 %v675, 7
    %v677 = vsub.s32 %v674, %v676
    %v678 = vrot.slane %v649, %v677
    %vm679 = vcmask 130112
    %v680 = vsel %vm679, %v678, %v673
    %v681 = vadd.s32 %v669, 4294967280
    %v682 = vlaneseq
    %v683 = vshrl.u32 %v682, 7
    %v684 = vsub.s32 %v681, %v683
    %v685 = vrot.slane %v652, %v684
    %vm686 = vcmask 195712
    %v687 = vsel %vm686, %v685, %v680
    %v688 = vadd.s32 %v669, 4294967272
    %v689 = vlaneseq
    %v690 = vshrl.u32 %v689, 7
    %v691 = vsub.s32 %v688, %v690
    %v692 = vrot.slane %v655, %v691
    %vm693 = vcmask 261312
    %v694 = vsel %vm693, %v692, %v687
    %v695 = vlaneseq
    %v696 = vshrl.u32 %v695, 7
    %v697 = vsub.s32 %v669, %v696
    %v698 = vrot.slane %v658, %v697
    %v699 = vlaneseq
    %v700 = vshrl.u32 %v699, 7
    %v701 = vsub.s32 %v674, %v700
    %v702 = vrot.slane %v661, %v701
    %v703 = vsel %vm679, %v702, %v698
    %v704 = vlaneseq
    %v705 = vshrl.u32 %v704, 7
    %v706 = vsub.s32 %v681, %v705
    %v707 = vrot.slane %v664, %v706
    %v708 = vsel %vm686, %v707, %v703
    %v709 = vlaneseq
    %v710 = vshrl.u32 %v709, 7
    %v711 = vsub.s32 %v688, %v710
    %v712 = vrot.slane %v667, %v711
    %v713 = vsel %vm693, %v712, %v708
    %vm714 = vcmask 1041409
    %v715 = vsel %vm714, %v713, %v694
    %v716 = vsel %vm54, %v715, 0
    %718 = vmatprep.subr.mxu0 0.0
    %719 = vmatpush1.msra.mxu0 %v596
    %720 = vmatprep.subr.mxu0 0.0
    %721 = vmatpush1.msra.mxu0 %v597
    %722 = vmatprep.subr.mxu0 0.0
    %723 = vmatpush1.msra.mxu0 %v598
    %724 = vmatprep.subr.mxu0 0.0
    %725 = vmatpush1.msra.mxu0 %v599
    %726 = vmatprep.subr.mxu0 0.0
    %727 = vmatpush1.msra.mxu0 0.0
    %728 = vmatprep.subr.mxu0 0.0
    %729 = vmatpush1.msra.mxu0 0.0
    %730 = vmatprep.subr.mxu0 0.0
    %731 = vmatpush1.msra.mxu0 0.0
    %732 = vmatprep.subr.mxu0 0.0
    %733 = vmatpush1.msra.mxu0 0.0
    %734 = vmatprep.subr.mxu0 0.0
    %735 = vmatpush1.msra.mxu0 0.0
    %736 = vmatprep.subr.mxu0 0.0
    %737 = vmatpush1.msra.mxu0 0.0
    %738 = vmatprep.subr.mxu0 0.0
    %739 = vmatpush1.msra.mxu0 0.0
    %740 = vmatprep.subr.mxu0 0.0
    %741 = vmatpush1.msra.mxu0 0.0
    %742 = vmatprep.subr.mxu0 0.0
    %743 = vmatpush1.msra.mxu0 0.0
    %744 = vmatprep.subr.mxu0 0.0
    %745 = vmatpush1.msra.mxu0 0.0
    %746 = vmatprep.subr.mxu0 0.0
    %747 = vmatpush1.msra.mxu0 0.0
    %748 = vmatprep.subr.mxu0 0.0
    %749 = vmatpush1.msra.mxu0 0.0
    %750 = vmatprep.subr.mxu0 0.0
    %751 = vmatpush1.msra.mxu0 0.0
    %752 = vmatprep.subr.mxu0 0.0
    %753 = vmatpush1.msra.mxu0 0.0
    %754 = vmatprep.subr.mxu0 0.0
    %755 = vmatpush1.msra.mxu0 0.0
    %756 = vmatprep.subr.mxu0 0.0
    %757 = vmatpush1.msra.mxu0 0.0
    %758 = vmatprep.subr.mxu0 0.0
    %759 = vmatpush1.msra.mxu0 0.0
    %760 = vmatprep.subr.mxu0 0.0
    %761 = vmatpush1.msra.mxu0 0.0
    %762 = vmatprep.subr.mxu0 0.0
    %763 = vmatpush1.msra.mxu0 0.0
    %764 = vmatprep.subr.mxu0 0.0
    %765 = vmatpush1.msra.mxu0 0.0
    %766 = vmatprep.subr.mxu0 0.0
    %767 = vmatpush1.msra.mxu0 0.0
    %768 = vmatprep.subr.mxu0 0.0
    %769 = vmatpush1.msra.mxu0 0.0
    %770 = vmatprep.subr.mxu0 0.0
    %771 = vmatpush1.msra.mxu0 0.0
    %772 = vmatprep.subr.mxu0 0.0
    %773 = vmatpush1.msra.mxu0 0.0
    %774 = vmatprep.subr.mxu0 0.0
    %775 = vmatpush1.msra.mxu0 0.0
    %776 = vmatprep.subr.mxu0 0.0
    %777 = vmatpush1.msra.mxu0 0.0
    %778 = vmatprep.subr.mxu0 0.0
    %779 = vmatpush1.msra.mxu0 0.0
    %780 = vmatprep.subr.mxu0 0.0
    %781 = vmatpush1.msra.mxu0 0.0
    %782 = vmatprep.mubr.f32.mxu0 0.0
    %783 = vmatmul.mubr.f32.gmra.mrb[0].mxu0 %v716
    %v784 = vpop.f32.mrb[0].mxu0
    %v785 = vadd.f32 0.0, %v784
    %v786 = vpop.f32.mrb[0].mxu0
    %787 = vdwg.mxu0
    %796 = vset.pattern.permute.xlu0 0
    %797 = vperm.xlu0 %796, %v354
    %v798 = vpop.permute.xlu0 %797
    %799 = vset.pattern.permute.xlu0 0
    %800 = vperm.xlu0 %799, %v355
    %v801 = vpop.permute.xlu0 %800
    %802 = vset.pattern.permute.xlu0 0
    %803 = vperm.xlu0 %802, %v356
    %v804 = vpop.permute.xlu0 %803
    %805 = vset.pattern.permute.xlu0 0
    %806 = vperm.xlu0 %805, %v357
    %v807 = vpop.permute.xlu0 %806
    %808 = vset.pattern.permute.xlu0 0
    %809 = vperm.xlu0 %808, %v358
    %v810 = vpop.permute.xlu0 %809
    %811 = vset.pattern.permute.xlu0 0
    %812 = vperm.xlu0 %811, %v359
    %v813 = vpop.permute.xlu0 %812
    %814 = vset.pattern.permute.xlu0 0
    %815 = vperm.xlu0 %814, %v360
    %v816 = vpop.permute.xlu0 %815
    %817 = vset.pattern.permute.xlu0 0
    %818 = vperm.xlu0 %817, %v361
    %v819 = vpop.permute.xlu0 %818
    %v820 = vlaneseq
    %v821 = vshrl.u32 %v820, 7
    %v822 = vsub.s32 %v669, %v821
    %v823 = vrot.slane %v798, %v822
    %v824 = vlaneseq
    %v825 = vshrl.u32 %v824, 7
    %v826 = vsub.s32 %v674, %v825
    %v827 = vrot.slane %v801, %v826
    %v828 = vsel %vm679, %v827, %v823
    %v829 = vlaneseq
    %v830 = vshrl.u32 %v829, 7
    %v831 = vsub.s32 %v681, %v830
    %v832 = vrot.slane %v804, %v831
    %v833 = vsel %vm686, %v832, %v828
    %v834 = vlaneseq
    %v835 = vshrl.u32 %v834, 7
    %v836 = vsub.s32 %v688, %v835
    %v837 = vrot.slane %v807, %v836
    %v838 = vsel %vm693, %v837, %v833
    %v839 = vlaneseq
    %v840 = vshrl.u32 %v839, 7
    %v841 = vsub.s32 %v669, %v840
    %v842 = vrot.slane %v810, %v841
    %v843 = vlaneseq
    %v844 = vshrl.u32 %v843, 7
    %v845 = vsub.s32 %v674, %v844
    %v846 = vrot.slane %v813, %v845
    %v847 = vsel %vm679, %v846, %v842
    %v848 = vlaneseq
    %v849 = vshrl.u32 %v848, 7
    %v850 = vsub.s32 %v681, %v849
    %v851 = vrot.slane %v816, %v850
    %v852 = vsel %vm686, %v851, %v847
    %v853 = vlaneseq
    %v854 = vshrl.u32 %v853, 7
    %v855 = vsub.s32 %v688, %v854
    %v856 = vrot.slane %v819, %v855
    %v857 = vsel %vm693, %v856, %v852
    %v858 = vsel %vm714, %v857, %v838
    %v859 = vsel %vm54, %v858, 0
    %861 = vmatprep.subr.mxu0 0.0
    %862 = vmatpush1.msra.mxu0 %v600
    %863 = vmatprep.subr.mxu0 0.0
    %864 = vmatpush1.msra.mxu0 %v601
    %865 = vmatprep.subr.mxu0 0.0
    %866 = vmatpush1.msra.mxu0 %v602
    %867 = vmatprep.subr.mxu0 0.0
    %868 = vmatpush1.msra.mxu0 %v603
    %869 = vmatprep.subr.mxu0 0.0
    %870 = vmatpush1.msra.mxu0 0.0
    %871 = vmatprep.subr.mxu0 0.0
    %872 = vmatpush1.msra.mxu0 0.0
    %873 = vmatprep.subr.mxu0 0.0
    %874 = vmatpush1.msra.mxu0 0.0
    %875 = vmatprep.subr.mxu0 0.0
    %876 = vmatpush1.msra.mxu0 0.0
    %877 = vmatprep.subr.mxu0 0.0
    %878 = vmatpush1.msra.mxu0 0.0
    %879 = vmatprep.subr.mxu0 0.0
    %880 = vmatpush1.msra.mxu0 0.0
    %881 = vmatprep.subr.mxu0 0.0
    %882 = vmatpush1.msra.mxu0 0.0
    %883 = vmatprep.subr.mxu0 0.0
    %884 = vmatpush1.msra.mxu0 0.0
    %885 = vmatprep.subr.mxu0 0.0
    %886 = vmatpush1.msra.mxu0 0.0
    %887 = vmatprep.subr.mxu0 0.0
    %888 = vmatpush1.msra.mxu0 0.0
    %889 = vmatprep.subr.mxu0 0.0
    %890 = vmatpush1.msra.mxu0 0.0
    %891 = vmatprep.subr.mxu0 0.0
    %892 = vmatpush1.msra.mxu0 0.0
    %893 = vmatprep.subr.mxu0 0.0
    %894 = vmatpush1.msra.mxu0 0.0
    %895 = vmatprep.subr.mxu0 0.0
    %896 = vmatpush1.msra.mxu0 0.0
    %897 = vmatprep.subr.mxu0 0.0
    %898 = vmatpush1.msra.mxu0 0.0
    %899 = vmatprep.subr.mxu0 0.0
    %900 = vmatpush1.msra.mxu0 0.0
    %901 = vmatprep.subr.mxu0 0.0
    %902 = vmatpush1.msra.mxu0 0.0
    %903 = vmatprep.subr.mxu0 0.0
    %904 = vmatpush1.msra.mxu0 0.0
    %905 = vmatprep.subr.mxu0 0.0
    %906 = vmatpush1.msra.mxu0 0.0
    %907 = vmatprep.subr.mxu0 0.0
    %908 = vmatpush1.msra.mxu0 0.0
    %909 = vmatprep.subr.mxu0 0.0
    %910 = vmatpush1.msra.mxu0 0.0
    %911 = vmatprep.subr.mxu0 0.0
    %912 = vmatpush1.msra.mxu0 0.0
    %913 = vmatprep.subr.mxu0 0.0
    %914 = vmatpush1.msra.mxu0 0.0
    %915 = vmatprep.subr.mxu0 0.0
    %916 = vmatpush1.msra.mxu0 0.0
    %917 = vmatprep.subr.mxu0 0.0
    %918 = vmatpush1.msra.mxu0 0.0
    %919 = vmatprep.subr.mxu0 0.0
    %920 = vmatpush1.msra.mxu0 0.0
    %921 = vmatprep.subr.mxu0 0.0
    %922 = vmatpush1.msra.mxu0 0.0
    %923 = vmatprep.subr.mxu0 0.0
    %924 = vmatpush1.msra.mxu0 0.0
    %925 = vmatprep.mubr.f32.mxu0 0.0
    %926 = vmatmul.mubr.f32.gmra.mrb[0].mxu0 %v859
    %v927 = vpop.f32.mrb[0].mxu0
    %v928 = vadd.f32 0.0, %v927
    %v929 = vpop.f32.mrb[0].mxu0
    %930 = vdwg.mxu0
    %939 = vset.pattern.permute.xlu0 0
    %940 = vperm.xlu0 %939, %v370
    %v941 = vpop.permute.xlu0 %940
    %942 = vset.pattern.permute.xlu0 0
    %943 = vperm.xlu0 %942, %v371
    %v944 = vpop.permute.xlu0 %943
    %945 = vset.pattern.permute.xlu0 0
    %946 = vperm.xlu0 %945, %v372
    %v947 = vpop.permute.xlu0 %946
    %948 = vset.pattern.permute.xlu0 0
    %949 = vperm.xlu0 %948, %v373
    %v950 = vpop.permute.xlu0 %949
    %951 = vset.pattern.permute.xlu0 0
    %952 = vperm.xlu0 %951, %v374
    %v953 = vpop.permute.xlu0 %952
    %954 = vset.pattern.permute.xlu0 0
    %955 = vperm.xlu0 %954, %v375
    %v956 = vpop.permute.xlu0 %955
    %957 = vset.pattern.permute.xlu0 0
    %958 = vperm.xlu0 %957, %v376
    %v959 = vpop.permute.xlu0 %958
    %960 = vset.pattern.permute.xlu0 0
    %961 = vperm.xlu0 %960, %v377
    %v962 = vpop.permute.xlu0 %961
    %v963 = vlaneseq
    %v964 = vshrl.u32 %v963, 7
    %v965 = vsub.s32 %v669, %v964
    %v966 = vrot.slane %v941, %v965
    %v967 = vlaneseq
    %v968 = vshrl.u32 %v967, 7
    %v969 = vsub.s32 %v674, %v968
    %v970 = vrot.slane %v944, %v969
    %v971 = vsel %vm679, %v970, %v966
    %v972 = vlaneseq
    %v973 = vshrl.u32 %v972, 7
    %v974 = vsub.s32 %v681, %v973
    %v975 = vrot.slane %v947, %v974
    %v976 = vsel %vm686, %v975, %v971
    %v977 = vlaneseq
    %v978 = vshrl.u32 %v977, 7
    %v979 = vsub.s32 %v688, %v978
    %v980 = vrot.slane %v950, %v979
    %v981 = vsel %vm693, %v980, %v976
    %v982 = vlaneseq
    %v983 = vshrl.u32 %v982, 7
    %v984 = vsub.s32 %v669, %v983
    %v985 = vrot.slane %v953, %v984
    %v986 = vlaneseq
    %v987 = vshrl.u32 %v986, 7
    %v988 = vsub.s32 %v674, %v987
    %v989 = vrot.slane %v956, %v988
    %v990 = vsel %vm679, %v989, %v985
    %v991 = vlaneseq
    %v992 = vshrl.u32 %v991, 7
    %v993 = vsub.s32 %v681, %v992
    %v994 = vrot.slane %v959, %v993
    %v995 = vsel %vm686, %v994, %v990
    %v996 = vlaneseq
    %v997 = vshrl.u32 %v996, 7
    %v998 = vsub.s32 %v688, %v997
    %v999 = vrot.slane %v962, %v998
    %v1000 = vsel %vm693, %v999, %v995
    %v1001 = vsel %vm714, %v1000, %v981
    %v1002 = vsel %vm54, %v1001, 0
    %1004 = vmatprep.subr.mxu0 0.0
    %1005 = vmatpush1.msra.mxu0 %v604
    %1006 = vmatprep.subr.mxu0 0.0
    %1007 = vmatpush1.msra.mxu0 %v605
    %1008 = vmatprep.subr.mxu0 0.0
    %1009 = vmatpush1.msra.mxu0 %v606
    %1010 = vmatprep.subr.mxu0 0.0
    %1011 = vmatpush1.msra.mxu0 %v607
    %1012 = vmatprep.subr.mxu0 0.0
    %1013 = vmatpush1.msra.mxu0 0.0
    %1014 = vmatprep.subr.mxu0 0.0
    %1015 = vmatpush1.msra.mxu0 0.0
    %1016 = vmatprep.subr.mxu0 0.0
    %1017 = vmatpush1.msra.mxu0 0.0
    %1018 = vmatprep.subr.mxu0 0.0
    %1019 = vmatpush1.msra.mxu0 0.0
    %1020 = vmatprep.subr.mxu0 0.0
    %1021 = vmatpush1.msra.mxu0 0.0
    %1022 = vmatprep.subr.mxu0 0.0
    %1023 = vmatpush1.msra.mxu0 0.0
    %1024 = vmatprep.subr.mxu0 0.0
    %1025 = vmatpush1.msra.mxu0 0.0
    %1026 = vmatprep.subr.mxu0 0.0
    %1027 = vmatpush1.msra.mxu0 0.0
    %1028 = vmatprep.subr.mxu0 0.0
    %1029 = vmatpush1.msra.mxu0 0.0
    %1030 = vmatprep.subr.mxu0 0.0
    %1031 = vmatpush1.msra.mxu0 0.0
    %1032 = vmatprep.subr.mxu0 0.0
    %1033 = vmatpush1.msra.mxu0 0.0
    %1034 = vmatprep.subr.mxu0 0.0
    %1035 = vmatpush1.msra.mxu0 0.0
    %1036 = vmatprep.subr.mxu0 0.0
    %1037 = vmatpush1.msra.mxu0 0.0
    %1038 = vmatprep.subr.mxu0 0.0
    %1039 = vmatpush1.msra.mxu0 0.0
    %1040 = vmatprep.subr.mxu0 0.0
    %1041 = vmatpush1.msra.mxu0 0.0
    %1042 = vmatprep.subr.mxu0 0.0
    %1043 = vmatpush1.msra.mxu0 0.0
    %1044 = vmatprep.subr.mxu0 0.0
    %1045 = vmatpush1.msra.mxu0 0.0
    %1046 = vmatprep.subr.mxu0 0.0
    %1047 = vmatpush1.msra.mxu0 0.0
    %1048 = vmatprep.subr.mxu0 0.0
    %1049 = vmatpush1.msra.mxu0 0.0
    %1050 = vmatprep.subr.mxu0 0.0
    %1051 = vmatpush1.msra.mxu0 0.0
    %1052 = vmatprep.subr.mxu0 0.0
    %1053 = vmatpush1.msra.mxu0 0.0
    %1054 = vmatprep.subr.mxu0 0.0
    %1055 = vmatpush1.msra.mxu0 0.0
    %1056 = vmatprep.subr.mxu0 0.0
    %1057 = vmatpush1.msra.mxu0 0.0
    %1058 = vmatprep.subr.mxu0 0.0
    %1059 = vmatpush1.msra.mxu0 0.0
    %1060 = vmatprep.subr.mxu0 0.0
    %1061 = vmatpush1.msra.mxu0 0.0
    %1062 = vmatprep.subr.mxu0 0.0
    %1063 = vmatpush1.msra.mxu0 0.0
    %1064 = vmatprep.subr.mxu0 0.0
    %1065 = vmatpush1.msra.mxu0 0.0
    %1066 = vmatprep.subr.mxu0 0.0
    %1067 = vmatpush1.msra.mxu0 0.0
    %1068 = vmatprep.mubr.f32.mxu0 0.0
    %1069 = vmatmul.mubr.f32.gmra.mrb[0].mxu0 %v1002
    %v1070 = vpop.f32.mrb[0].mxu0
    %v1071 = vadd.f32 0.0, %v1070
    %v1072 = vpop.f32.mrb[0].mxu0
    %1073 = vdwg.mxu0
    %1082 = vset.pattern.permute.xlu0 0
    %1083 = vperm.xlu0 %1082, %v386
    %v1084 = vpop.permute.xlu0 %1083
    %1085 = vset.pattern.permute.xlu0 0
    %1086 = vperm.xlu0 %1085, %v387
    %v1087 = vpop.permute.xlu0 %1086
    %1088 = vset.pattern.permute.xlu0 0
    %1089 = vperm.xlu0 %1088, %v388
    %v1090 = vpop.permute.xlu0 %1089
    %1091 = vset.pattern.permute.xlu0 0
    %1092 = vperm.xlu0 %1091, %v389
    %v1093 = vpop.permute.xlu0 %1092
    %1094 = vset.pattern.permute.xlu0 0
    %1095 = vperm.xlu0 %1094, %v390
    %v1096 = vpop.permute.xlu0 %1095
    %1097 = vset.pattern.permute.xlu0 0
    %1098 = vperm.xlu0 %1097, %v391
    %v1099 = vpop.permute.xlu0 %1098
    %1100 = vset.pattern.permute.xlu0 0
    %1101 = vperm.xlu0 %1100, %v392
    %v1102 = vpop.permute.xlu0 %1101
    %1103 = vset.pattern.permute.xlu0 0
    %1104 = vperm.xlu0 %1103, %v393
    %v1105 = vpop.permute.xlu0 %1104
    %v1106 = vlaneseq
    %v1107 = vshrl.u32 %v1106, 7
    %v1108 = vsub.s32 %v669, %v1107
    %v1109 = vrot.slane %v1084, %v1108
    %v1110 = vlaneseq
    %v1111 = vshrl.u32 %v1110, 7
    %v1112 = vsub.s32 %v674, %v1111
    %v1113 = vrot.slane %v1087, %v1112
    %v1114 = vsel %vm679, %v1113, %v1109
    %v1115 = vlaneseq
    %v1116 = vshrl.u32 %v1115, 7
    %v1117 = vsub.s32 %v681, %v1116
    %v1118 = vrot.slane %v1090, %v1117
    %v1119 = vsel %vm686, %v1118, %v1114
    %v1120 = vlaneseq
    %v1121 = vshrl.u32 %v1120, 7
    %v1122 = vsub.s32 %v688, %v1121
    %v1123 = vrot.slane %v1093, %v1122
    %v1124 = vsel %vm693, %v1123, %v1119
    %v1125 = vlaneseq
    %v1126 = vshrl.u32 %v1125, 7
    %v1127 = vsub.s32 %v669, %v1126
    %v1128 = vrot.slane %v1096, %v1127
    %v1129 = vlaneseq
    %v1130 = vshrl.u32 %v1129, 7
    %v1131 = vsub.s32 %v674, %v1130
    %v1132 = vrot.slane %v1099, %v1131
    %v1133 = vsel %vm679, %v1132, %v1128
    %v1134 = vlaneseq
    %v1135 = vshrl.u32 %v1134, 7
    %v1136 = vsub.s32 %v681, %v1135
    %v1137 = vrot.slane %v1102, %v1136
    %v1138 = vsel %vm686, %v1137, %v1133
    %v1139 = vlaneseq
    %v1140 = vshrl.u32 %v1139, 7
    %v1141 = vsub.s32 %v688, %v1140
    %v1142 = vrot.slane %v1105, %v1141
    %v1143 = vsel %vm693, %v1142, %v1138
    %v1144 = vsel %vm714, %v1143, %v1124
    %v1145 = vsel %vm54, %v1144, 0
    %1147 = vmatprep.subr.mxu0 0.0
    %1148 = vmatpush1.msra.mxu0 %v608
    %1149 = vmatprep.subr.mxu0 0.0
    %1150 = vmatpush1.msra.mxu0 %v609
    %1151 = vmatprep.subr.mxu0 0.0
    %1152 = vmatpush1.msra.mxu0 %v610
    %1153 = vmatprep.subr.mxu0 0.0
    %1154 = vmatpush1.msra.mxu0 %v611
    %1155 = vmatprep.subr.mxu0 0.0
    %1156 = vmatpush1.msra.mxu0 0.0
    %1157 = vmatprep.subr.mxu0 0.0
    %1158 = vmatpush1.msra.mxu0 0.0
    %1159 = vmatprep.subr.mxu0 0.0
    %1160 = vmatpush1.msra.mxu0 0.0
    %1161 = vmatprep.subr.mxu0 0.0
    %1162 = vmatpush1.msra.mxu0 0.0
    %1163 = vmatprep.subr.mxu0 0.0
    %1164 = vmatpush1.msra.mxu0 0.0
    %1165 = vmatprep.subr.mxu0 0.0
    %1166 = vmatpush1.msra.mxu0 0.0
    %1167 = vmatprep.subr.mxu0 0.0
    %1168 = vmatpush1.msra.mxu0 0.0
    %1169 = vmatprep.subr.mxu0 0.0
    %1170 = vmatpush1.msra.mxu0 0.0
    %1171 = vmatprep.subr.mxu0 0.0
    %1172 = vmatpush1.msra.mxu0 0.0
    %1173 = vmatprep.subr.mxu0 0.0
    %1174 = vmatpush1.msra.mxu0 0.0
    %1175 = vmatprep.subr.mxu0 0.0
    %1176 = vmatpush1.msra.mxu0 0.0
    %1177 = vmatprep.subr.mxu0 0.0
    %1178 = vmatpush1.msra.mxu0 0.0
    %1179 = vmatprep.subr.mxu0 0.0
    %1180 = vmatpush1.msra.mxu0 0.0
    %1181 = vmatprep.subr.mxu0 0.0
    %1182 = vmatpush1.msra.mxu0 0.0
    %1183 = vmatprep.subr.mxu0 0.0
    %1184 = vmatpush1.msra.mxu0 0.0
    %1185 = vmatprep.subr.mxu0 0.0
    %1186 = vmatpush1.msra.mxu0 0.0
    %1187 = vmatprep.subr.mxu0 0.0
    %1188 = vmatpush1.msra.mxu0 0.0
    %1189 = vmatprep.subr.mxu0 0.0
    %1190 = vmatpush1.msra.mxu0 0.0
    %1191 = vmatprep.subr.mxu0 0.0
    %1192 = vmatpush1.msra.mxu0 0.0
    %1193 = vmatprep.subr.mxu0 0.0
    %1194 = vmatpush1.msra.mxu0 0.0
    %1195 = vmatprep.subr.mxu0 0.0
    %1196 = vmatpush1.msra.mxu0 0.0
    %1197 = vmatprep.subr.mxu0 0.0
    %1198 = vmatpush1.msra.mxu0 0.0
    %1199 = vmatprep.subr.mxu0 0.0
    %1200 = vmatpush1.msra.mxu0 0.0
    %1201 = vmatprep.subr.mxu0 0.0
    %1202 = vmatpush1.msra.mxu0 0.0
    %1203 = vmatprep.subr.mxu0 0.0
    %1204 = vmatpush1.msra.mxu0 0.0
    %1205 = vmatprep.subr.mxu0 0.0
    %1206 = vmatpush1.msra.mxu0 0.0
    %1207 = vmatprep.subr.mxu0 0.0
    %1208 = vmatpush1.msra.mxu0 0.0
    %1209 = vmatprep.subr.mxu0 0.0
    %1210 = vmatpush1.msra.mxu0 0.0
    %1211 = vmatprep.mubr.f32.mxu0 0.0
    %1212 = vmatmul.mubr.f32.gmra.mrb[0].mxu0 %v1145
    %v1213 = vpop.f32.mrb[0].mxu0
    %v1214 = vadd.f32 0.0, %v1213
    %v1215 = vpop.f32.mrb[0].mxu0
    %1216 = vdwg.mxu0
    %1225 = vset.pattern.permute.xlu0 0
    %1226 = vperm.xlu0 %1225, %v418
    %v1227 = vpop.permute.xlu0 %1226
    %1228 = vset.pattern.permute.xlu0 0
    %1229 = vperm.xlu0 %1228, %v419
    %v1230 = vpop.permute.xlu0 %1229
    %1231 = vset.pattern.permute.xlu0 0
    %1232 = vperm.xlu0 %1231, %v420
    %v1233 = vpop.permute.xlu0 %1232
    %1234 = vset.pattern.permute.xlu0 0
    %1235 = vperm.xlu0 %1234, %v421
    %v1236 = vpop.permute.xlu0 %1235
    %1237 = vset.pattern.permute.xlu0 0
    %1238 = vperm.xlu0 %1237, %v422
    %v1239 = vpop.permute.xlu0 %1238
    %1240 = vset.pattern.permute.xlu0 0
    %1241 = vperm.xlu0 %1240, %v423
    %v1242 = vpop.permute.xlu0 %1241
    %1243 = vset.pattern.permute.xlu0 0
    %1244 = vperm.xlu0 %1243, %v424
    %v1245 = vpop.permute.xlu0 %1244
    %1246 = vset.pattern.permute.xlu0 0
    %1247 = vperm.xlu0 %1246, %v425
    %v1248 = vpop.permute.xlu0 %1247
    %v1249 = vlaneseq
    %v1250 = vshrl.u32 %v1249, 7
    %v1251 = vsub.s32 %v669, %v1250
    %v1252 = vrot.slane %v1227, %v1251
    %v1253 = vlaneseq
    %v1254 = vshrl.u32 %v1253, 7
    %v1255 = vsub.s32 %v674, %v1254
    %v1256 = vrot.slane %v1230, %v1255
    %v1257 = vsel %vm679, %v1256, %v1252
    %v1258 = vlaneseq
    %v1259 = vshrl.u32 %v1258, 7
    %v1260 = vsub.s32 %v681, %v1259
    %v1261 = vrot.slane %v1233, %v1260
    %v1262 = vsel %vm686, %v1261, %v1257
    %v1263 = vlaneseq
    %v1264 = vshrl.u32 %v1263, 7
    %v1265 = vsub.s32 %v688, %v1264
    %v1266 = vrot.slane %v1236, %v1265
    %v1267 = vsel %vm693, %v1266, %v1262
    %v1268 = vlaneseq
    %v1269 = vshrl.u32 %v1268, 7
    %v1270 = vsub.s32 %v669, %v1269
    %v1271 = vrot.slane %v1239, %v1270
    %v1272 = vlaneseq
    %v1273 = vshrl.u32 %v1272, 7
    %v1274 = vsub.s32 %v674, %v1273
    %v1275 = vrot.slane %v1242, %v1274
    %v1276 = vsel %vm679, %v1275, %v1271
    %v1277 = vlaneseq
    %v1278 = vshrl.u32 %v1277, 7
    %v1279 = vsub.s32 %v681, %v1278
    %v1280 = vrot.slane %v1245, %v1279
    %v1281 = vsel %vm686, %v1280, %v1276
    %v1282 = vlaneseq
    %v1283 = vshrl.u32 %v1282, 7
    %v1284 = vsub.s32 %v688, %v1283
    %v1285 = vrot.slane %v1248, %v1284
    %v1286 = vsel %vm693, %v1285, %v1281
    %v1287 = vsel %vm714, %v1286, %v1267
    %v1288 = vsel %vm54, %v1287, 0
    %1290 = vmatprep.subr.mxu0 0.0
    %1291 = vmatpush1.msra.mxu0 %v612
    %1292 = vmatprep.subr.mxu0 0.0
    %1293 = vmatpush1.msra.mxu0 %v613
    %1294 = vmatprep.subr.mxu0 0.0
    %1295 = vmatpush1.msra.mxu0 %v614
    %1296 = vmatprep.subr.mxu0 0.0
    %1297 = vmatpush1.msra.mxu0 %v615
    %1298 = vmatprep.subr.mxu0 0.0
    %1299 = vmatpush1.msra.mxu0 0.0
    %1300 = vmatprep.subr.mxu0 0.0
    %1301 = vmatpush1.msra.mxu0 0.0
    %1302 = vmatprep.subr.mxu0 0.0
    %1303 = vmatpush1.msra.mxu0 0.0
    %1304 = vmatprep.subr.mxu0 0.0
    %1305 = vmatpush1.msra.mxu0 0.0
    %1306 = vmatprep.subr.mxu0 0.0
    %1307 = vmatpush1.msra.mxu0 0.0
    %1308 = vmatprep.subr.mxu0 0.0
    %1309 = vmatpush1.msra.mxu0 0.0
    %1310 = vmatprep.subr.mxu0 0.0
    %1311 = vmatpush1.msra.mxu0 0.0
    %1312 = vmatprep.subr.mxu0 0.0
    %1313 = vmatpush1.msra.mxu0 0.0
    %1314 = vmatprep.subr.mxu0 0.0
    %1315 = vmatpush1.msra.mxu0 0.0
    %1316 = vmatprep.subr.mxu0 0.0
    %1317 = vmatpush1.msra.mxu0 0.0
    %1318 = vmatprep.subr.mxu0 0.0
    %1319 = vmatpush1.msra.mxu0 0.0
    %1320 = vmatprep.subr.mxu0 0.0
    %1321 = vmatpush1.msra.mxu0 0.0
    %1322 = vmatprep.subr.mxu0 0.0
    %1323 = vmatpush1.msra.mxu0 0.0
    %1324 = vmatprep.subr.mxu0 0.0
    %1325 = vmatpush1.msra.mxu0 0.0
    %1326 = vmatprep.subr.mxu0 0.0
    %1327 = vmatpush1.msra.mxu0 0.0
    %1328 = vmatprep.subr.mxu0 0.0
    %1329 = vmatpush1.msra.mxu0 0.0
    %1330 = vmatprep.subr.mxu0 0.0
    %1331 = vmatpush1.msra.mxu0 0.0
    %1332 = vmatprep.subr.mxu0 0.0
    %1333 = vmatpush1.msra.mxu0 0.0
    %1334 = vmatprep.subr.mxu0 0.0
    %1335 = vmatpush1.msra.mxu0 0.0
    %1336 = vmatprep.subr.mxu0 0.0
    %1337 = vmatpush1.msra.mxu0 0.0
    %1338 = vmatprep.subr.mxu0 0.0
    %1339 = vmatpush1.msra.mxu0 0.0
    %1340 = vmatprep.subr.mxu0 0.0
    %1341 = vmatpush1.msra.mxu0 0.0
    %1342 = vmatprep.subr.mxu0 0.0
    %1343 = vmatpush1.msra.mxu0 0.0
    %1344 = vmatprep.subr.mxu0 0.0
    %1345 = vmatpush1.msra.mxu0 0.0
    %1346 = vmatprep.subr.mxu0 0.0
    %1347 = vmatpush1.msra.mxu0 0.0
    %1348 = vmatprep.subr.mxu0 0.0
    %1349 = vmatpush1.msra.mxu0 0.0
    %1350 = vmatprep.subr.mxu0 0.0
    %1351 = vmatpush1.msra.mxu0 0.0
    %1352 = vmatprep.subr.mxu0 0.0
    %1353 = vmatpush1.msra.mxu0 0.0
    %1354 = vmatprep.mubr.f32.mxu0 0.0
    %1355 = vmatmul.mubr.f32.gmra.mrb[0].mxu0 %v1288
    %v1356 = vpop.f32.mrb[0].mxu0
    %v1357 = vadd.f32 0.0, %v1356
    %v1358 = vpop.f32.mrb[0].mxu0
    %1359 = vdwg.mxu0
    %1368 = vset.pattern.permute.xlu0 0
    %1369 = vperm.xlu0 %1368, %v450
    %v1370 = vpop.permute.xlu0 %1369
    %1371 = vset.pattern.permute.xlu0 0
    %1372 = vperm.xlu0 %1371, %v451
    %v1373 = vpop.permute.xlu0 %1372
    %1374 = vset.pattern.permute.xlu0 0
    %1375 = vperm.xlu0 %1374, %v452
    %v1376 = vpop.permute.xlu0 %1375
    %1377 = vset.pattern.permute.xlu0 0
    %1378 = vperm.xlu0 %1377, %v453
    %v1379 = vpop.permute.xlu0 %1378
    %1380 = vset.pattern.permute.xlu0 0
    %1381 = vperm.xlu0 %1380, %v454
    %v1382 = vpop.permute.xlu0 %1381
    %1383 = vset.pattern.permute.xlu0 0
    %1384 = vperm.xlu0 %1383, %v455
    %v1385 = vpop.permute.xlu0 %1384
    %1386 = vset.pattern.permute.xlu0 0
    %1387 = vperm.xlu0 %1386, %v456
    %v1388 = vpop.permute.xlu0 %1387
    %1389 = vset.pattern.permute.xlu0 0
    %1390 = vperm.xlu0 %1389, %v457
    %v1391 = vpop.permute.xlu0 %1390
    %v1392 = vlaneseq
    %v1393 = vshrl.u32 %v1392, 7
    %v1394 = vsub.s32 %v669, %v1393
    %v1395 = vrot.slane %v1370, %v1394
    %v1396 = vlaneseq
    %v1397 = vshrl.u32 %v1396, 7
    %v1398 = vsub.s32 %v674, %v1397
    %v1399 = vrot.slane %v1373, %v1398
    %v1400 = vsel %vm679, %v1399, %v1395
    %v1401 = vlaneseq
    %v1402 = vshrl.u32 %v1401, 7
    %v1403 = vsub.s32 %v681, %v1402
    %v1404 = vrot.slane %v1376, %v1403
    %v1405 = vsel %vm686, %v1404, %v1400
    %v1406 = vlaneseq
    %v1407 = vshrl.u32 %v1406, 7
    %v1408 = vsub.s32 %v688, %v1407
    %v1409 = vrot.slane %v1379, %v1408
    %v1410 = vsel %vm693, %v1409, %v1405
    %v1411 = vlaneseq
    %v1412 = vshrl.u32 %v1411, 7
    %v1413 = vsub.s32 %v669, %v1412
    %v1414 = vrot.slane %v1382, %v1413
    %v1415 = vlaneseq
    %v1416 = vshrl.u32 %v1415, 7
    %v1417 = vsub.s32 %v674, %v1416
    %v1418 = vrot.slane %v1385, %v1417
    %v1419 = vsel %vm679, %v1418, %v1414
    %v1420 = vlaneseq
    %v1421 = vshrl.u32 %v1420, 7
    %v1422 = vsub.s32 %v681, %v1421
    %v1423 = vrot.slane %v1388, %v1422
    %v1424 = vsel %vm686, %v1423, %v1419
    %v1425 = vlaneseq
    %v1426 = vshrl.u32 %v1425, 7
    %v1427 = vsub.s32 %v688, %v1426
    %v1428 = vrot.slane %v1391, %v1427
    %v1429 = vsel %vm693, %v1428, %v1424
    %v1430 = vsel %vm714, %v1429, %v1410
    %v1431 = vsel %vm54, %v1430, 0
    %1433 = vmatprep.subr.mxu0 0.0
    %1434 = vmatpush1.msra.mxu0 %v616
    %1435 = vmatprep.subr.mxu0 0.0
    %1436 = vmatpush1.msra.mxu0 %v617
    %1437 = vmatprep.subr.mxu0 0.0
    %1438 = vmatpush1.msra.mxu0 %v618
    %1439 = vmatprep.subr.mxu0 0.0
    %1440 = vmatpush1.msra.mxu0 %v619
    %1441 = vmatprep.subr.mxu0 0.0
    %1442 = vmatpush1.msra.mxu0 0.0
    %1443 = vmatprep.subr.mxu0 0.0
    %1444 = vmatpush1.msra.mxu0 0.0
    %1445 = vmatprep.subr.mxu0 0.0
    %1446 = vmatpush1.msra.mxu0 0.0
    %1447 = vmatprep.subr.mxu0 0.0
    %1448 = vmatpush1.msra.mxu0 0.0
    %1449 = vmatprep.subr.mxu0 0.0
    %1450 = vmatpush1.msra.mxu0 0.0
    %1451 = vmatprep.subr.mxu0 0.0
    %1452 = vmatpush1.msra.mxu0 0.0
    %1453 = vmatprep.subr.mxu0 0.0
    %1454 = vmatpush1.msra.mxu0 0.0
    %1455 = vmatprep.subr.mxu0 0.0
    %1456 = vmatpush1.msra.mxu0 0.0
    %1457 = vmatprep.subr.mxu0 0.0
    %1458 = vmatpush1.msra.mxu0 0.0
    %1459 = vmatprep.subr.mxu0 0.0
    %1460 = vmatpush1.msra.mxu0 0.0
    %1461 = vmatprep.subr.mxu0 0.0
    %1462 = vmatpush1.msra.mxu0 0.0
    %1463 = vmatprep.subr.mxu0 0.0
    %1464 = vmatpush1.msra.mxu0 0.0
    %1465 = vmatprep.subr.mxu0 0.0
    %1466 = vmatpush1.msra.mxu0 0.0
    %1467 = vmatprep.subr.mxu0 0.0
    %1468 = vmatpush1.msra.mxu0 0.0
    %1469 = vmatprep.subr.mxu0 0.0
    %1470 = vmatpush1.msra.mxu0 0.0
    %1471 = vmatprep.subr.mxu0 0.0
    %1472 = vmatpush1.msra.mxu0 0.0
    %1473 = vmatprep.subr.mxu0 0.0
    %1474 = vmatpush1.msra.mxu0 0.0
    %1475 = vmatprep.subr.mxu0 0.0
    %1476 = vmatpush1.msra.mxu0 0.0
    %1477 = vmatprep.subr.mxu0 0.0
    %1478 = vmatpush1.msra.mxu0 0.0
    %1479 = vmatprep.subr.mxu0 0.0
    %1480 = vmatpush1.msra.mxu0 0.0
    %1481 = vmatprep.subr.mxu0 0.0
    %1482 = vmatpush1.msra.mxu0 0.0
    %1483 = vmatprep.subr.mxu0 0.0
    %1484 = vmatpush1.msra.mxu0 0.0
    %1485 = vmatprep.subr.mxu0 0.0
    %1486 = vmatpush1.msra.mxu0 0.0
    %1487 = vmatprep.subr.mxu0 0.0
    %1488 = vmatpush1.msra.mxu0 0.0
    %1489 = vmatprep.subr.mxu0 0.0
    %1490 = vmatpush1.msra.mxu0 0.0
    %1491 = vmatprep.subr.mxu0 0.0
    %1492 = vmatpush1.msra.mxu0 0.0
    %1493 = vmatprep.subr.mxu0 0.0
    %1494 = vmatpush1.msra.mxu0 0.0
    %1495 = vmatprep.subr.mxu0 0.0
    %1496 = vmatpush1.msra.mxu0 0.0
    %1497 = vmatprep.mubr.f32.mxu0 0.0
    %1498 = vmatmul.mubr.f32.gmra.mrb[0].mxu0 %v1431
    %v1499 = vpop.f32.mrb[0].mxu0
    %v1500 = vadd.f32 0.0, %v1499
    %v1501 = vpop.f32.mrb[0].mxu0
    %1502 = vdwg.mxu0
    %1511 = vset.pattern.permute.xlu0 0
    %1512 = vperm.xlu0 %1511, %v482
    %v1513 = vpop.permute.xlu0 %1512
    %1514 = vset.pattern.permute.xlu0 0
    %1515 = vperm.xlu0 %1514, %v483
    %v1516 = vpop.permute.xlu0 %1515
    %1517 = vset.pattern.permute.xlu0 0
    %1518 = vperm.xlu0 %1517, %v484
    %v1519 = vpop.permute.xlu0 %1518
    %1520 = vset.pattern.permute.xlu0 0
    %1521 = vperm.xlu0 %1520, %v485
    %v1522 = vpop.permute.xlu0 %1521
    %1523 = vset.pattern.permute.xlu0 0
    %1524 = vperm.xlu0 %1523, %v486
    %v1525 = vpop.permute.xlu0 %1524
    %1526 = vset.pattern.permute.xlu0 0
    %1527 = vperm.xlu0 %1526, %v487
    %v1528 = vpop.permute.xlu0 %1527
    %1529 = vset.pattern.permute.xlu0 0
    %1530 = vperm.xlu0 %1529, %v488
    %v1531 = vpop.permute.xlu0 %1530
    %1532 = vset.pattern.permute.xlu0 0
    %1533 = vperm.xlu0 %1532, %v489
    %v1534 = vpop.permute.xlu0 %1533
    %v1535 = vlaneseq
    %v1536 = vshrl.u32 %v1535, 7
    %v1537 = vsub.s32 %v669, %v1536
    %v1538 = vrot.slane %v1513, %v1537
    %v1539 = vlaneseq
    %v1540 = vshrl.u32 %v1539, 7
    %v1541 = vsub.s32 %v674, %v1540
    %v1542 = vrot.slane %v1516, %v1541
    %v1543 = vsel %vm679, %v1542, %v1538
    %v1544 = vlaneseq
    %v1545 = vshrl.u32 %v1544, 7
    %v1546 = vsub.s32 %v681, %v1545
    %v1547 = vrot.slane %v1519, %v1546
    %v1548 = vsel %vm686, %v1547, %v1543
    %v1549 = vlaneseq
    %v1550 = vshrl.u32 %v1549, 7
    %v1551 = vsub.s32 %v688, %v1550
    %v1552 = vrot.slane %v1522, %v1551
    %v1553 = vsel %vm693, %v1552, %v1548
    %v1554 = vlaneseq
    %v1555 = vshrl.u32 %v1554, 7
    %v1556 = vsub.s32 %v669, %v1555
    %v1557 = vrot.slane %v1525, %v1556
    %v1558 = vlaneseq
    %v1559 = vshrl.u32 %v1558, 7
    %v1560 = vsub.s32 %v674, %v1559
    %v1561 = vrot.slane %v1528, %v1560
    %v1562 = vsel %vm679, %v1561, %v1557
    %v1563 = vlaneseq
    %v1564 = vshrl.u32 %v1563, 7
    %v1565 = vsub.s32 %v681, %v1564
    %v1566 = vrot.slane %v1531, %v1565
    %v1567 = vsel %vm686, %v1566, %v1562
    %v1568 = vlaneseq
    %v1569 = vshrl.u32 %v1568, 7
    %v1570 = vsub.s32 %v688, %v1569
    %v1571 = vrot.slane %v1534, %v1570
    %v1572 = vsel %vm693, %v1571, %v1567
    %v1573 = vsel %vm714, %v1572, %v1553
    %v1574 = vsel %vm54, %v1573, 0
    %1576 = vmatprep.subr.mxu0 0.0
    %1577 = vmatpush1.msra.mxu0 %v620
    %1578 = vmatprep.subr.mxu0 0.0
    %1579 = vmatpush1.msra.mxu0 %v621
    %1580 = vmatprep.subr.mxu0 0.0
    %1581 = vmatpush1.msra.mxu0 %v622
    %1582 = vmatprep.subr.mxu0 0.0
    %1583 = vmatpush1.msra.mxu0 %v623
    %1584 = vmatprep.subr.mxu0 0.0
    %1585 = vmatpush1.msra.mxu0 0.0
    %1586 = vmatprep.subr.mxu0 0.0
    %1587 = vmatpush1.msra.mxu0 0.0
    %1588 = vmatprep.subr.mxu0 0.0
    %1589 = vmatpush1.msra.mxu0 0.0
    %1590 = vmatprep.subr.mxu0 0.0
    %1591 = vmatpush1.msra.mxu0 0.0
    %1592 = vmatprep.subr.mxu0 0.0
    %1593 = vmatpush1.msra.mxu0 0.0
    %1594 = vmatprep.subr.mxu0 0.0
    %1595 = vmatpush1.msra.mxu0 0.0
    %1596 = vmatprep.subr.mxu0 0.0
    %1597 = vmatpush1.msra.mxu0 0.0
    %1598 = vmatprep.subr.mxu0 0.0
    %1599 = vmatpush1.msra.mxu0 0.0
    %1600 = vmatprep.subr.mxu0 0.0
    %1601 = vmatpush1.msra.mxu0 0.0
    %1602 = vmatprep.subr.mxu0 0.0
    %1603 = vmatpush1.msra.mxu0 0.0
    %1604 = vmatprep.subr.mxu0 0.0
    %1605 = vmatpush1.msra.mxu0 0.0
    %1606 = vmatprep.subr.mxu0 0.0
    %1607 = vmatpush1.msra.mxu0 0.0
    %1608 = vmatprep.subr.mxu0 0.0
    %1609 = vmatpush1.msra.mxu0 0.0
    %1610 = vmatprep.subr.mxu0 0.0
    %1611 = vmatpush1.msra.mxu0 0.0
    %1612 = vmatprep.subr.mxu0 0.0
    %1613 = vmatpush1.msra.mxu0 0.0
    %1614 = vmatprep.subr.mxu0 0.0
    %1615 = vmatpush1.msra.mxu0 0.0
    %1616 = vmatprep.subr.mxu0 0.0
    %1617 = vmatpush1.msra.mxu0 0.0
    %1618 = vmatprep.subr.mxu0 0.0
    %1619 = vmatpush1.msra.mxu0 0.0
    %1620 = vmatprep.subr.mxu0 0.0
    %1621 = vmatpush1.msra.mxu0 0.0
    %1622 = vmatprep.subr.mxu0 0.0
    %1623 = vmatpush1.msra.mxu0 0.0
    %1624 = vmatprep.subr.mxu0 0.0
    %1625 = vmatpush1.msra.mxu0 0.0
    %1626 = vmatprep.subr.mxu0 0.0
    %1627 = vmatpush1.msra.mxu0 0.0
    %1628 = vmatprep.subr.mxu0 0.0
    %1629 = vmatpush1.msra.mxu0 0.0
    %1630 = vmatprep.subr.mxu0 0.0
    %1631 = vmatpush1.msra.mxu0 0.0
    %1632 = vmatprep.subr.mxu0 0.0
    %1633 = vmatpush1.msra.mxu0 0.0
    %1634 = vmatprep.subr.mxu0 0.0
    %1635 = vmatpush1.msra.mxu0 0.0
    %1636 = vmatprep.subr.mxu0 0.0
    %1637 = vmatpush1.msra.mxu0 0.0
    %1638 = vmatprep.subr.mxu0 0.0
    %1639 = vmatpush1.msra.mxu0 0.0
    %1640 = vmatprep.mubr.f32.mxu0 0.0
    %1641 = vmatmul.mubr.f32.gmra.mrb[0].mxu0 %v1574
    %v1642 = vpop.f32.mrb[0].mxu0
    %v1643 = vadd.f32 0.0, %v1642
    %v1644 = vpop.f32.mrb[0].mxu0
    %1645 = vdwg.mxu0
    %1654 = vset.pattern.permute.xlu0 0
    %1655 = vperm.xlu0 %1654, %v514
    %v1656 = vpop.permute.xlu0 %1655
    %1657 = vset.pattern.permute.xlu0 0
    %1658 = vperm.xlu0 %1657, %v515
    %v1659 = vpop.permute.xlu0 %1658
    %1660 = vset.pattern.permute.xlu0 0
    %1661 = vperm.xlu0 %1660, %v516
    %v1662 = vpop.permute.xlu0 %1661
    %1663 = vset.pattern.permute.xlu0 0
    %1664 = vperm.xlu0 %1663, %v517
    %v1665 = vpop.permute.xlu0 %1664
    %1666 = vset.pattern.permute.xlu0 0
    %1667 = vperm.xlu0 %1666, %v518
    %v1668 = vpop.permute.xlu0 %1667
    %1669 = vset.pattern.permute.xlu0 0
    %1670 = vperm.xlu0 %1669, %v519
    %v1671 = vpop.permute.xlu0 %1670
    %1672 = vset.pattern.permute.xlu0 0
    %1673 = vperm.xlu0 %1672, %v520
    %v1674 = vpop.permute.xlu0 %1673
    %1675 = vset.pattern.permute.xlu0 0
    %1676 = vperm.xlu0 %1675, %v521
    %v1677 = vpop.permute.xlu0 %1676
    %v1678 = vlaneseq
    %v1679 = vshrl.u32 %v1678, 7
    %v1680 = vsub.s32 %v669, %v1679
    %v1681 = vrot.slane %v1656, %v1680
    %v1682 = vlaneseq
    %v1683 = vshrl.u32 %v1682, 7
    %v1684 = vsub.s32 %v674, %v1683
    %v1685 = vrot.slane %v1659, %v1684
    %v1686 = vsel %vm679, %v1685, %v1681
    %v1687 = vlaneseq
    %v1688 = vshrl.u32 %v1687, 7
    %v1689 = vsub.s32 %v681, %v1688
    %v1690 = vrot.slane %v1662, %v1689
    %v1691 = vsel %vm686, %v1690, %v1686
    %v1692 = vlaneseq
    %v1693 = vshrl.u32 %v1692, 7
    %v1694 = vsub.s32 %v688, %v1693
    %v1695 = vrot.slane %v1665, %v1694
    %v1696 = vsel %vm693, %v1695, %v1691
    %v1697 = vlaneseq
    %v1698 = vshrl.u32 %v1697, 7
    %v1699 = vsub.s32 %v669, %v1698
    %v1700 = vrot.slane %v1668, %v1699
    %v1701 = vlaneseq
    %v1702 = vshrl.u32 %v1701, 7
    %v1703 = vsub.s32 %v674, %v1702
    %v1704 = vrot.slane %v1671, %v1703
    %v1705 = vsel %vm679, %v1704, %v1700
    %v1706 = vlaneseq
    %v1707 = vshrl.u32 %v1706, 7
    %v1708 = vsub.s32 %v681, %v1707
    %v1709 = vrot.slane %v1674, %v1708
    %v1710 = vsel %vm686, %v1709, %v1705
    %v1711 = vlaneseq
    %v1712 = vshrl.u32 %v1711, 7
    %v1713 = vsub.s32 %v688, %v1712
    %v1714 = vrot.slane %v1677, %v1713
    %v1715 = vsel %vm693, %v1714, %v1710
    %v1716 = vsel %vm714, %v1715, %v1696
    %v1717 = vsel %vm54, %v1716, 0
    %1719 = vmatprep.subr.mxu0 0.0
    %1720 = vmatpush1.msra.mxu0 %v624
    %1721 = vmatprep.subr.mxu0 0.0
    %1722 = vmatpush1.msra.mxu0 %v625
    %1723 = vmatprep.subr.mxu0 0.0
    %1724 = vmatpush1.msra.mxu0 %v626
    %1725 = vmatprep.subr.mxu0 0.0
    %1726 = vmatpush1.msra.mxu0 %v627
    %1727 = vmatprep.subr.mxu0 0.0
    %1728 = vmatpush1.msra.mxu0 0.0
    %1729 = vmatprep.subr.mxu0 0.0
    %1730 = vmatpush1.msra.mxu0 0.0
    %1731 = vmatprep.subr.mxu0 0.0
    %1732 = vmatpush1.msra.mxu0 0.0
    %1733 = vmatprep.subr.mxu0 0.0
    %1734 = vmatpush1.msra.mxu0 0.0
    %1735 = vmatprep.subr.mxu0 0.0
    %1736 = vmatpush1.msra.mxu0 0.0
    %1737 = vmatprep.subr.mxu0 0.0
    %1738 = vmatpush1.msra.mxu0 0.0
    %1739 = vmatprep.subr.mxu0 0.0
    %1740 = vmatpush1.msra.mxu0 0.0
    %1741 = vmatprep.subr.mxu0 0.0
    %1742 = vmatpush1.msra.mxu0 0.0
    %1743 = vmatprep.subr.mxu0 0.0
    %1744 = vmatpush1.msra.mxu0 0.0
    %1745 = vmatprep.subr.mxu0 0.0
    %1746 = vmatpush1.msra.mxu0 0.0
    %1747 = vmatprep.subr.mxu0 0.0
    %1748 = vmatpush1.msra.mxu0 0.0
    %1749 = vmatprep.subr.mxu0 0.0
    %1750 = vmatpush1.msra.mxu0 0.0
    %1751 = vmatprep.subr.mxu0 0.0
    %1752 = vmatpush1.msra.mxu0 0.0
    %1753 = vmatprep.subr.mxu0 0.0
    %1754 = vmatpush1.msra.mxu0 0.0
    %1755 = vmatprep.subr.mxu0 0.0
    %1756 = vmatpush1.msra.mxu0 0.0
    %1757 = vmatprep.subr.mxu0 0.0
    %1758 = vmatpush1.msra.mxu0 0.0
    %1759 = vmatprep.subr.mxu0 0.0
    %1760 = vmatpush1.msra.mxu0 0.0
    %1761 = vmatprep.subr.mxu0 0.0
    %1762 = vmatpush1.msra.mxu0 0.0
    %1763 = vmatprep.subr.mxu0 0.0
    %1764 = vmatpush1.msra.mxu0 0.0
    %1765 = vmatprep.subr.mxu0 0.0
    %1766 = vmatpush1.msra.mxu0 0.0
    %1767 = vmatprep.subr.mxu0 0.0
    %1768 = vmatpush1.msra.mxu0 0.0
    %1769 = vmatprep.subr.mxu0 0.0
    %1770 = vmatpush1.msra.mxu0 0.0
    %1771 = vmatprep.subr.mxu0 0.0
    %1772 = vmatpush1.msra.mxu0 0.0
    %1773 = vmatprep.subr.mxu0 0.0
    %1774 = vmatpush1.msra.mxu0 0.0
    %1775 = vmatprep.subr.mxu0 0.0
    %1776 = vmatpush1.msra.mxu0 0.0
    %1777 = vmatprep.subr.mxu0 0.0
    %1778 = vmatpush1.msra.mxu0 0.0
    %1779 = vmatprep.subr.mxu0 0.0
    %1780 = vmatpush1.msra.mxu0 0.0
    %1781 = vmatprep.subr.mxu0 0.0
    %1782 = vmatpush1.msra.mxu0 0.0
    %1783 = vmatprep.mubr.f32.mxu0 0.0
    %1784 = vmatmul.mubr.f32.gmra.mrb[0].mxu0 %v1717
    %v1785 = vpop.f32.mrb[0].mxu0
    %v1786 = vadd.f32 0.0, %v1785
    %v1787 = vpop.f32.mrb[0].mxu0
    %1788 = vdwg.mxu0
    %1797 = vset.pattern.permute.xlu0 0
    %1798 = vperm.xlu0 %1797, %v546
    %v1799 = vpop.permute.xlu0 %1798
    %1800 = vset.pattern.permute.xlu0 0
    %1801 = vperm.xlu0 %1800, %v547
    %v1802 = vpop.permute.xlu0 %1801
    %1803 = vset.pattern.permute.xlu0 0
    %1804 = vperm.xlu0 %1803, %v548
    %v1805 = vpop.permute.xlu0 %1804
    %1806 = vset.pattern.permute.xlu0 0
    %1807 = vperm.xlu0 %1806, %v549
    %v1808 = vpop.permute.xlu0 %1807
    %1809 = vset.pattern.permute.xlu0 0
    %1810 = vperm.xlu0 %1809, %v550
    %v1811 = vpop.permute.xlu0 %1810
    %1812 = vset.pattern.permute.xlu0 0
    %1813 = vperm.xlu0 %1812, %v551
    %v1814 = vpop.permute.xlu0 %1813
    %1815 = vset.pattern.permute.xlu0 0
    %1816 = vperm.xlu0 %1815, %v552
    %v1817 = vpop.permute.xlu0 %1816
    %1818 = vset.pattern.permute.xlu0 0
    %1819 = vperm.xlu0 %1818, %v553
    %v1820 = vpop.permute.xlu0 %1819
    %v1821 = vlaneseq
    %v1822 = vshrl.u32 %v1821, 7
    %v1823 = vsub.s32 %v669, %v1822
    %v1824 = vrot.slane %v1799, %v1823
    %v1825 = vlaneseq
    %v1826 = vshrl.u32 %v1825, 7
    %v1827 = vsub.s32 %v674, %v1826
    %v1828 = vrot.slane %v1802, %v1827
    %v1829 = vsel %vm679, %v1828, %v1824
    %v1830 = vlaneseq
    %v1831 = vshrl.u32 %v1830, 7
    %v1832 = vsub.s32 %v681, %v1831
    %v1833 = vrot.slane %v1805, %v1832
    %v1834 = vsel %vm686, %v1833, %v1829
    %v1835 = vlaneseq
    %v1836 = vshrl.u32 %v1835, 7
    %v1837 = vsub.s32 %v688, %v1836
    %v1838 = vrot.slane %v1808, %v1837
    %v1839 = vsel %vm693, %v1838, %v1834
    %v1840 = vlaneseq
    %v1841 = vshrl.u32 %v1840, 7
    %v1842 = vsub.s32 %v669, %v1841
    %v1843 = vrot.slane %v1811, %v1842
    %v1844 = vlaneseq
    %v1845 = vshrl.u32 %v1844, 7
    %v1846 = vsub.s32 %v674, %v1845
    %v1847 = vrot.slane %v1814, %v1846
    %v1848 = vsel %vm679, %v1847, %v1843
    %v1849 = vlaneseq
    %v1850 = vshrl.u32 %v1849, 7
    %v1851 = vsub.s32 %v681, %v1850
    %v1852 = vrot.slane %v1817, %v1851
    %v1853 = vsel %vm686, %v1852, %v1848
    %v1854 = vlaneseq
    %v1855 = vshrl.u32 %v1854, 7
    %v1856 = vsub.s32 %v688, %v1855
    %v1857 = vrot.slane %v1820, %v1856
    %v1858 = vsel %vm693, %v1857, %v1853
    %v1859 = vsel %vm714, %v1858, %v1839
    %v1860 = vsel %vm54, %v1859, 0
    %1862 = vmatprep.subr.mxu0 0.0
    %1863 = vmatpush1.msra.mxu0 %v628
    %1864 = vmatprep.subr.mxu0 0.0
    %1865 = vmatpush1.msra.mxu0 %v629
    %1866 = vmatprep.subr.mxu0 0.0
    %1867 = vmatpush1.msra.mxu0 %v630
    %1868 = vmatprep.subr.mxu0 0.0
    %1869 = vmatpush1.msra.mxu0 %v631
    %1870 = vmatprep.subr.mxu0 0.0
    %1871 = vmatpush1.msra.mxu0 0.0
    %1872 = vmatprep.subr.mxu0 0.0
    %1873 = vmatpush1.msra.mxu0 0.0
    %1874 = vmatprep.subr.mxu0 0.0
    %1875 = vmatpush1.msra.mxu0 0.0
    %1876 = vmatprep.subr.mxu0 0.0
    %1877 = vmatpush1.msra.mxu0 0.0
    %1878 = vmatprep.subr.mxu0 0.0
    %1879 = vmatpush1.msra.mxu0 0.0
    %1880 = vmatprep.subr.mxu0 0.0
    %1881 = vmatpush1.msra.mxu0 0.0
    %1882 = vmatprep.subr.mxu0 0.0
    %1883 = vmatpush1.msra.mxu0 0.0
    %1884 = vmatprep.subr.mxu0 0.0
    %1885 = vmatpush1.msra.mxu0 0.0
    %1886 = vmatprep.subr.mxu0 0.0
    %1887 = vmatpush1.msra.mxu0 0.0
    %1888 = vmatprep.subr.mxu0 0.0
    %1889 = vmatpush1.msra.mxu0 0.0
    %1890 = vmatprep.subr.mxu0 0.0
    %1891 = vmatpush1.msra.mxu0 0.0
    %1892 = vmatprep.subr.mxu0 0.0
    %1893 = vmatpush1.msra.mxu0 0.0
    %1894 = vmatprep.subr.mxu0 0.0
    %1895 = vmatpush1.msra.mxu0 0.0
    %1896 = vmatprep.subr.mxu0 0.0
    %1897 = vmatpush1.msra.mxu0 0.0
    %1898 = vmatprep.subr.mxu0 0.0
    %1899 = vmatpush1.msra.mxu0 0.0
    %1900 = vmatprep.subr.mxu0 0.0
    %1901 = vmatpush1.msra.mxu0 0.0
    %1902 = vmatprep.subr.mxu0 0.0
    %1903 = vmatpush1.msra.mxu0 0.0
    %1904 = vmatprep.subr.mxu0 0.0
    %1905 = vmatpush1.msra.mxu0 0.0
    %1906 = vmatprep.subr.mxu0 0.0
    %1907 = vmatpush1.msra.mxu0 0.0
    %1908 = vmatprep.subr.mxu0 0.0
    %1909 = vmatpush1.msra.mxu0 0.0
    %1910 = vmatprep.subr.mxu0 0.0
    %1911 = vmatpush1.msra.mxu0 0.0
    %1912 = vmatprep.subr.mxu0 0.0
    %1913 = vmatpush1.msra.mxu0 0.0
    %1914 = vmatprep.subr.mxu0 0.0
    %1915 = vmatpush1.msra.mxu0 0.0
    %1916 = vmatprep.subr.mxu0 0.0
    %1917 = vmatpush1.msra.mxu0 0.0
    %1918 = vmatprep.subr.mxu0 0.0
    %1919 = vmatpush1.msra.mxu0 0.0
    %1920 = vmatprep.subr.mxu0 0.0
    %1921 = vmatpush1.msra.mxu0 0.0
    %1922 = vmatprep.subr.mxu0 0.0
    %1923 = vmatpush1.msra.mxu0 0.0
    %1924 = vmatprep.subr.mxu0 0.0
    %1925 = vmatpush1.msra.mxu0 0.0
    %1926 = vmatprep.mubr.f32.mxu0 0.0
    %1927 = vmatmul.mubr.f32.gmra.mrb[0].mxu0 %v1860
    %v1928 = vpop.f32.mrb[0].mxu0
    %v1929 = vadd.f32 0.0, %v1928
    %v1930 = vpop.f32.mrb[0].mxu0
    %1931 = vdwg.mxu0
    %1940 = vset.pattern.permute.xlu0 0
    %1941 = vperm.xlu0 %1940, %v578
    %v1942 = vpop.permute.xlu0 %1941
    %1943 = vset.pattern.permute.xlu0 0
    %1944 = vperm.xlu0 %1943, %v579
    %v1945 = vpop.permute.xlu0 %1944
    %1946 = vset.pattern.permute.xlu0 0
    %1947 = vperm.xlu0 %1946, %v580
    %v1948 = vpop.permute.xlu0 %1947
    %1949 = vset.pattern.permute.xlu0 0
    %1950 = vperm.xlu0 %1949, %v581
    %v1951 = vpop.permute.xlu0 %1950
    %1952 = vset.pattern.permute.xlu0 0
    %1953 = vperm.xlu0 %1952, %v582
    %v1954 = vpop.permute.xlu0 %1953
    %1955 = vset.pattern.permute.xlu0 0
    %1956 = vperm.xlu0 %1955, %v583
    %v1957 = vpop.permute.xlu0 %1956
    %1958 = vset.pattern.permute.xlu0 0
    %1959 = vperm.xlu0 %1958, %v584
    %v1960 = vpop.permute.xlu0 %1959
    %1961 = vset.pattern.permute.xlu0 0
    %1962 = vperm.xlu0 %1961, %v585
    %v1963 = vpop.permute.xlu0 %1962
    %v1964 = vlaneseq
    %v1965 = vshrl.u32 %v1964, 7
    %v1966 = vsub.s32 %v669, %v1965
    %v1967 = vrot.slane %v1942, %v1966
    %v1968 = vlaneseq
    %v1969 = vshrl.u32 %v1968, 7
    %v1970 = vsub.s32 %v674, %v1969
    %v1971 = vrot.slane %v1945, %v1970
    %v1972 = vsel %vm679, %v1971, %v1967
    %v1973 = vlaneseq
    %v1974 = vshrl.u32 %v1973, 7
    %v1975 = vsub.s32 %v681, %v1974
    %v1976 = vrot.slane %v1948, %v1975
    %v1977 = vsel %vm686, %v1976, %v1972
    %v1978 = vlaneseq
    %v1979 = vshrl.u32 %v1978, 7
    %v1980 = vsub.s32 %v688, %v1979
    %v1981 = vrot.slane %v1951, %v1980
    %v1982 = vsel %vm693, %v1981, %v1977
    %v1983 = vlaneseq
    %v1984 = vshrl.u32 %v1983, 7
    %v1985 = vsub.s32 %v669, %v1984
    %v1986 = vrot.slane %v1954, %v1985
    %v1987 = vlaneseq
    %v1988 = vshrl.u32 %v1987, 7
    %v1989 = vsub.s32 %v674, %v1988
    %v1990 = vrot.slane %v1957, %v1989
    %v1991 = vsel %vm679, %v1990, %v1986
    %v1992 = vlaneseq
    %v1993 = vshrl.u32 %v1992, 7
    %v1994 = vsub.s32 %v681, %v1993
    %v1995 = vrot.slane %v1960, %v1994
    %v1996 = vsel %vm686, %v1995, %v1991
    %v1997 = vlaneseq
    %v1998 = vshrl.u32 %v1997, 7
    %v1999 = vsub.s32 %v688, %v1998
    %v2000 = vrot.slane %v1963, %v1999
    %v2001 = vsel %vm693, %v2000, %v1996
    %v2002 = vsel %vm714, %v2001, %v1982
    %v2003 = vsel %vm54, %v2002, 0
    %2005 = vmatprep.subr.mxu0 0.0
    %2006 = vmatpush1.msra.mxu0 %v632
    %2007 = vmatprep.subr.mxu0 0.0
    %2008 = vmatpush1.msra.mxu0 %v633
    %2009 = vmatprep.subr.mxu0 0.0
    %2010 = vmatpush1.msra.mxu0 %v634
    %2011 = vmatprep.subr.mxu0 0.0
    %2012 = vmatpush1.msra.mxu0 %v635
    %2013 = vmatprep.subr.mxu0 0.0
    %2014 = vmatpush1.msra.mxu0 0.0
    %2015 = vmatprep.subr.mxu0 0.0
    %2016 = vmatpush1.msra.mxu0 0.0
    %2017 = vmatprep.subr.mxu0 0.0
    %2018 = vmatpush1.msra.mxu0 0.0
    %2019 = vmatprep.subr.mxu0 0.0
    %2020 = vmatpush1.msra.mxu0 0.0
    %2021 = vmatprep.subr.mxu0 0.0
    %2022 = vmatpush1.msra.mxu0 0.0
    %2023 = vmatprep.subr.mxu0 0.0
    %2024 = vmatpush1.msra.mxu0 0.0
    %2025 = vmatprep.subr.mxu0 0.0
    %2026 = vmatpush1.msra.mxu0 0.0
    %2027 = vmatprep.subr.mxu0 0.0
    %2028 = vmatpush1.msra.mxu0 0.0
    %2029 = vmatprep.subr.mxu0 0.0
    %2030 = vmatpush1.msra.mxu0 0.0
    %2031 = vmatprep.subr.mxu0 0.0
    %2032 = vmatpush1.msra.mxu0 0.0
    %2033 = vmatprep.subr.mxu0 0.0
    %2034 = vmatpush1.msra.mxu0 0.0
    %2035 = vmatprep.subr.mxu0 0.0
    %2036 = vmatpush1.msra.mxu0 0.0
    %2037 = vmatprep.subr.mxu0 0.0
    %2038 = vmatpush1.msra.mxu0 0.0
    %2039 = vmatprep.subr.mxu0 0.0
    %2040 = vmatpush1.msra.mxu0 0.0
    %2041 = vmatprep.subr.mxu0 0.0
    %2042 = vmatpush1.msra.mxu0 0.0
    %2043 = vmatprep.subr.mxu0 0.0
    %2044 = vmatpush1.msra.mxu0 0.0
    %2045 = vmatprep.subr.mxu0 0.0
    %2046 = vmatpush1.msra.mxu0 0.0
    %2047 = vmatprep.subr.mxu0 0.0
    %2048 = vmatpush1.msra.mxu0 0.0
    %2049 = vmatprep.subr.mxu0 0.0
    %2050 = vmatpush1.msra.mxu0 0.0
    %2051 = vmatprep.subr.mxu0 0.0
    %2052 = vmatpush1.msra.mxu0 0.0
    %2053 = vmatprep.subr.mxu0 0.0
    %2054 = vmatpush1.msra.mxu0 0.0
    %2055 = vmatprep.subr.mxu0 0.0
    %2056 = vmatpush1.msra.mxu0 0.0
    %2057 = vmatprep.subr.mxu0 0.0
    %2058 = vmatpush1.msra.mxu0 0.0
    %2059 = vmatprep.subr.mxu0 0.0
    %2060 = vmatpush1.msra.mxu0 0.0
    %2061 = vmatprep.subr.mxu0 0.0
    %2062 = vmatpush1.msra.mxu0 0.0
    %2063 = vmatprep.subr.mxu0 0.0
    %2064 = vmatpush1.msra.mxu0 0.0
    %2065 = vmatprep.subr.mxu0 0.0
    %2066 = vmatpush1.msra.mxu0 0.0
    %2067 = vmatprep.subr.mxu0 0.0
    %2068 = vmatpush1.msra.mxu0 0.0
    %2069 = vmatprep.mubr.f32.mxu0 0.0
    %2070 = vmatmul.mubr.f32.gmra.mrb[0].mxu0 %v2003
    %v2071 = vpop.f32.mrb[0].mxu0
    %v2072 = vadd.f32 0.0, %v2071
    %v2073 = vpop.f32.mrb[0].mxu0
    %2074 = vdwg.mxu0
    %v2075 = vadd.f32 %v586, %v785
    %v2076 = vadd.f32 %v587, %v928
    %v2077 = vadd.f32 %v588, %v1071
    %v2078 = vadd.f32 %v589, %v1214
    %v2079 = vadd.f32 %v590, %v1357
    %v2080 = vadd.f32 %v591, %v1500
    %v2081 = vadd.f32 %v592, %v1643
    %v2082 = vadd.f32 %v593, %v1786
    %v2083 = vadd.f32 %v594, %v1929
    %v2084 = vadd.f32 %v595, %v2072
    %2085 = vst [vmem:[#allocation2] sm:$0x3] %v2075
    %2086 = vst [vmem:[#allocation2 + $0x2] sm:$0x3] %v2076
    %2087 = vst [vmem:[#allocation2 + $0x4] sm:$0x3] %v2077
    %2088 = vst [vmem:[#allocation2 + $0x6] sm:$0x3] %v2078
    %2089 = vst [vmem:[#allocation2 + $0x8] sm:$0x3] %v2079
    %2090 = vst [vmem:[#allocation2 + $0xa] sm:$0x3] %v2080
    %2091 = vst [vmem:[#allocation2 + $0xc] sm:$0x3] %v2081
    %2092 = vst [vmem:[#allocation2 + $0xe] sm:$0x3] %v2082
    %2093 = vst [vmem:[#allocation2 + $0x10] sm:$0x3] %v2083
    %2094 = vst [vmem:[#allocation2 + $0x12] sm:$0x3] %v2084
    // Predicated region
    $region26: #{pyramid_feats.1} parent=1 // pred_check
      %p2095 = pneg %p32
    $region27: #{pyramid_feats.1} parent=1 // pred_check_branch
      %2097 = sbr.rel (%p2095) target = $region29
    $region28: #{pyramid_feats.1} parent=1 // pred_region
      %v2098 = vld [vmem:[#allocation2] sm:$0x3]
      %v2099 = vld [vmem:[#allocation2 + $0x2] sm:$0x3]
      %v2100 = vld [vmem:[#allocation2 + $0x4] sm:$0x3]
      %v2101 = vld [vmem:[#allocation2 + $0x6] sm:$0x3]
      %v2102 = vld [vmem:[#allocation2 + $0x8] sm:$0x3]
      %v2103 = vld [vmem:[#allocation2 + $0xa] sm:$0x3]
      %v2104 = vld [vmem:[#allocation2 + $0xc] sm:$0x3]
      %v2105 = vld [vmem:[#allocation2 + $0xe] sm:$0x3]
      %v2106 = vld [vmem:[#allocation2 + $0x10] sm:$0x3]
      %v2107 = vld [vmem:[#allocation2 + $0x12] sm:$0x3]
      %v2108 = vld [vmem:[%s2] sm:$0x1]
      %v2109 = vld [vmem:[%s2 + $0x1] sm:$0x1]
      %v2110 = vld [vmem:[%s2 + $0x2] sm:$0x1]
      %v2111 = vld [vmem:[%s2 + $0x3] sm:$0x1]
      %v2112 = vld [vmem:[%s2 + $0x4] sm:$0x1]
      %v2113 = vld [vmem:[%s2 + $0x5] sm:$0x1]
      %v2114 = vld [vmem:[%s2 + $0x6] sm:$0x1]
      %v2115 = vld [vmem:[%s2 + $0x7] sm:$0x1]
      %v2116 = vld [vmem:[%s2 + $0x8] sm:$0x1]
      %v2117 = vld [vmem:[%s2 + $0x9] sm:$0x1]
      %v2128 = vlaneseq
      %v2129 = vshrl.u32 %v2128, 7
      %v2130 = vsub.s32 0, %v2129
      %v2131 = vrot.slane %v2108, %v2130
      %v2132 = vlaneseq
      %v2133 = vshrl.u32 %v2132, 7
      %v2134 = vsub.s32 0, %v2133
      %v2135 = vrot.slane %v2109, %v2134
      %v2136 = vlaneseq
      %v2137 = vshrl.u32 %v2136, 7
      %v2138 = vsub.s32 0, %v2137
      %v2139 = vrot.slane %v2110, %v2138
      %v2140 = vlaneseq
      %v2141 = vshrl.u32 %v2140, 7
      %v2142 = vsub.s32 0, %v2141
      %v2143 = vrot.slane %v2111, %v2142
      %v2144 = vlaneseq
      %v2145 = vshrl.u32 %v2144, 7
      %v2146 = vsub.s32 0, %v2145
      %v2147 = vrot.slane %v2112, %v2146
      %v2148 = vlaneseq
      %v2149 = vshrl.u32 %v2148, 7
      %v2150 = vsub.s32 0, %v2149
      %v2151 = vrot.slane %v2113, %v2150
      %v2152 = vlaneseq
      %v2153 = vshrl.u32 %v2152, 7
      %v2154 = vsub.s32 0, %v2153
      %v2155 = vrot.slane %v2114, %v2154
      %v2156 = vlaneseq
      %v2157 = vshrl.u32 %v2156, 7
      %v2158 = vsub.s32 0, %v2157
      %v2159 = vrot.slane %v2115, %v2158
      %v2160 = vlaneseq
      %v2161 = vshrl.u32 %v2160, 7
      %v2162 = vsub.s32 0, %v2161
      %v2163 = vrot.slane %v2116, %v2162
      %v2164 = vlaneseq
      %v2165 = vshrl.u32 %v2164, 7
      %v2166 = vsub.s32 0, %v2165
      %v2167 = vrot.slane %v2117, %v2166
      %v2178 = vmul.f32 %v2098, %v2131
      %v2179 = vmul.f32 %v2099, %v2135
      %v2180 = vmul.f32 %v2100, %v2139
      %v2181 = vmul.f32 %v2101, %v2143
      %v2182 = vmul.f32 %v2102, %v2147
      %v2183 = vmul.f32 %v2103, %v2151
      %v2184 = vmul.f32 %v2104, %v2155
      %v2185 = vmul.f32 %v2105, %v2159
      %v2186 = vmul.f32 %v2106, %v2163
      %v2187 = vmul.f32 %v2107, %v2167
      %v2188 = vld [vmem:[#allocation3] sm:$0x1]
      %v2189 = vld [vmem:[#allocation3 + $0x1] sm:$0x1]
      %v2190 = vld [vmem:[#allocation3 + $0x2] sm:$0x1]
      %v2191 = vld [vmem:[#allocation3 + $0x3] sm:$0x1]
      %v2192 = vld [vmem:[#allocation3 + $0x4] sm:$0x1]
      %v2193 = vld [vmem:[#allocation3 + $0x5] sm:$0x1]
      %v2194 = vld [vmem:[#allocation3 + $0x6] sm:$0x1]
      %v2195 = vld [vmem:[#allocation3 + $0x7] sm:$0x1]
      %v2196 = vld [vmem:[#allocation3 + $0x8] sm:$0x1]
      %v2197 = vld [vmem:[#allocation3 + $0x9] sm:$0x1]
      %v2208 = vlaneseq
      %v2209 = vshrl.u32 %v2208, 7
      %v2210 = vsub.s32 0, %v2209
      %v2211 = vrot.slane %v2188, %v2210
      %v2212 = vlaneseq
      %v2213 = vshrl.u32 %v2212, 7
      %v2214 = vsub.s32 0, %v2213
      %v2215 = vrot.slane %v2189, %v2214
      %v2216 = vlaneseq
      %v2217 = vshrl.u32 %v2216, 7
      %v2218 = vsub.s32 0, %v2217
      %v2219 = vrot.slane %v2190, %v2218
      %v2220 = vlaneseq
      %v2221 = vshrl.u32 %v2220, 7
      %v2222 = vsub.s32 0, %v2221
      %v2223 = vrot.slane %v2191, %v2222
      %v2224 = vlaneseq
      %v2225 = vshrl.u32 %v2224, 7
      %v2226 = vsub.s32 0, %v2225
      %v2227 = vrot.slane %v2192, %v2226
      %v2228 = vlaneseq
      %v2229 = vshrl.u32 %v2228, 7
      %v2230 = vsub.s32 0, %v2229
      %v2231 = vrot.slane %v2193, %v2230
      %v2232 = vlaneseq
      %v2233 = vshrl.u32 %v2232, 7
      %v2234 = vsub.s32 0, %v2233
      %v2235 = vrot.slane %v2194, %v2234
      %v2236 = vlaneseq
      %v2237 = vshrl.u32 %v2236, 7
      %v2238 = vsub.s32 0, %v2237
      %v2239 = vrot.slane %v2195, %v2238
      %v2240 = vlaneseq
      %v2241 = vshrl.u32 %v2240, 7
      %v2242 = vsub.s32 0, %v2241
      %v2243 = vrot.slane %v2196, %v2242
      %v2244 = vlaneseq
      %v2245 = vshrl.u32 %v2244, 7
      %v2246 = vsub.s32 0, %v2245
      %v2247 = vrot.slane %v2197, %v2246
      %v2258 = vadd.f32 %v2178, %v2211
      %v2259 = vadd.f32 %v2179, %v2215
      %v2260 = vadd.f32 %v2180, %v2219
      %v2261 = vadd.f32 %v2181, %v2223
      %v2262 = vadd.f32 %v2182, %v2227
      %v2263 = vadd.f32 %v2183, %v2231
      %v2264 = vadd.f32 %v2184, %v2235
      %v2265 = vadd.f32 %v2185, %v2239
      %v2266 = vadd.f32 %v2186, %v2243
      %v2267 = vadd.f32 %v2187, %v2247
      %v2268 = vmax.f32 %v2258, 0.0
      %v2269 = vmax.f32 %v2259, 0.0
      %v2270 = vmax.f32 %v2260, 0.0
      %v2271 = vmax.f32 %v2261, 0.0
      %v2272 = vmax.f32 %v2262, 0.0
      %v2273 = vmax.f32 %v2263, 0.0
      %v2274 = vmax.f32 %v2264, 0.0
      %v2275 = vmax.f32 %v2265, 0.0
      %v2276 = vmax.f32 %v2266, 0.0
      %v2277 = vmax.f32 %v2267, 0.0
      %2278 = vst [vmem:[#allocation6] sm:$0x3] %v2268
      %2279 = vst [vmem:[#allocation6 + $0x2] sm:$0x3] %v2269
      %2280 = vst [vmem:[#allocation6 + $0x4] sm:$0x3] %v2270
      %2281 = vst [vmem:[#allocation6 + $0x6] sm:$0x3] %v2271
      %2282 = vst [vmem:[#allocation6 + $0x8] sm:$0x3] %v2272
      %2283 = vst [vmem:[#allocation6 + $0xa] sm:$0x3] %v2273
      %2284 = vst [vmem:[#allocation6 + $0xc] sm:$0x3] %v2274
      %2285 = vst [vmem:[#allocation6 + $0xe] sm:$0x3] %v2275
      %2286 = vst [vmem:[#allocation6 + $0x10] sm:$0x3] %v2276
      %2287 = vst [vmem:[#allocation6 + $0x12] sm:$0x3] %v2277
    $region29: #{pyramid_feats.1} parent=1 // pred_fallthru
      _
    // Predicated region
    $region30: #{pyramid_feats.1} parent=1 // pred_check
      _
    $region31: #{pyramid_feats.1} parent=1 // pred_check_branch
      %2289 = sbr.rel (0) target = $region33
    $region32: #{pyramid_feats.1} parent=1 // pred_region
      %s2291 = ssub.s32 320, 320
      %2292 = vsyncadd [#allocation5], %s2291
      %s2294 = sshll.u32 [#allocation6], 4
      %s2295 = int_to_ptr.vmem [resolvable:$true] %s2294
      %2297 = dma.vmem_to_hbm [thread:$0]  %s2295, 320, %s4, [#allocation5]
    $region33: #{pyramid_feats.1} parent=1 // pred_fallthru
      _
    // Predicated region
    $region34: #{pyramid_feats.1} parent=1 // pred_check
      _
    $region35: #{pyramid_feats.1} parent=1 // pred_check_branch
      %2299 = sbr.rel (0) target = $region37
    $region36: #{pyramid_feats.1} parent=1 // pred_region
      %2300 = dma.done [#allocation5], 320
    $region37: #{pyramid_feats.1} parent=1 // pred_fallthru
      _
    %2301 = vsyncpa [#allocation4], 1
    %2302 = vsyncpa [#allocation5], 1

</llo_original>
